<compile_context>
chip_gen: v5e
topology: v5e:2x2
jax: 0.10.0
libtpu: 0.0.40
codegen_flags: <defaults>
</compile_context>

<pallas_src>
import functools

import jax
import jax.numpy as jnp
from jax.experimental import pallas as pl
from jax.experimental.pallas import tpu as pltpu


def _round_up(x, m):
    return (x + m - 1) // m * m


# --------------------------------------------------------------------------
# CollageOperator2d.collage_partition_info (verbatim arithmetic)
# --------------------------------------------------------------------------
def collage_partition_info(res, dh, dw, rh, rw, n_aug_transforms):
    n_dh, n_dw = res // dh, res // dw
    n_domains = n_dh * n_dw
    n_domains = n_domains + n_domains * n_aug_transforms
    h_factors, w_factors = dh // rh, dw // rw
    n_rh, n_rw = res // rh, res // rw
    n_ranges = n_rh * n_rw
    return n_dh, n_dw, n_rh, n_rw, h_factors, w_factors, n_domains, n_ranges


# --------------------------------------------------------------------------
# Linear "net" head: single-K-pass matmul + bias (bf16 in, f32 accumulate).
# --------------------------------------------------------------------------
def _linear_head_kernel(x_ref, w_ref, b_ref, o_ref):
    o_ref[...] = (jnp.dot(x_ref[...], w_ref[...],
                          preferred_element_type=jnp.float32) + b_ref[...])


def linear_head(x_flat, w, b, *, tm=256, tn=256):
    # Single K pass: no reduction grid axis, no accumulator scratch, no init/
    # finalize branches.  Fine while Kp*(tm+tn) bf16 fits VMEM (K here = 1024).
    M, K = x_flat.shape
    N = w.shape[1]
    tm = min(tm, _round_up(M, 8))
    tn = min(tn, _round_up(N, 128))
    Mp, Np, Kp = _round_up(M, tm), _round_up(N, tn), _round_up(K, 128)

    x_p = jnp.pad(x_flat.astype(jnp.float32),
                  ((0, Mp - M), (0, Kp - K))).astype(jnp.bfloat16)
    w_p = jnp.pad(w.astype(jnp.float32),
                  ((0, Kp - K), (0, Np - N))).astype(jnp.bfloat16)
    b_p = jnp.pad(b.astype(jnp.float32), (0, Np - N)).reshape(1, Np)

    out = pl.pallas_call(
        _linear_head_kernel,
        out_shape=jax.ShapeDtypeStruct((Mp, Np), jnp.float32),
        grid_spec=pltpu.PrefetchScalarGridSpec(
            num_scalar_prefetch=0,
            grid=(Mp // tm, Np // tn),
            in_specs=[
                pl.BlockSpec((tm, Kp), lambda i, j: (i, 0)),
                pl.BlockSpec((Kp, tn), lambda i, j: (0, j)),
                pl.BlockSpec((1, tn), lambda i, j: (0, j)),
            ],
            out_specs=pl.BlockSpec((tm, tn), lambda i, j: (i, j)),
        ),
        compiler_params=pltpu.CompilerParams(
            dimension_semantics=("parallel", "parallel")),
    )(x_p, w_p, b_p)
    return out[:M, :N]


# --------------------------------------------------------------------------
# Constant operators, built once in the wrapper.
#   T  (P, P): pool-the-single-domain + tile-over-ranges;  vec(tiled) = vec(z) @ T
#   E  (NRp, P): 0/1 range->pixel expansion;  w_img = w_compact @ E
# --------------------------------------------------------------------------
def _build_collage_operator(res, rh, rw, hf, wf):
    i_idx = jnp.arange(res)[:, None]
    u_idx = jnp.arange(res)[None, :]
    Ph = ((u_idx // hf) == (i_idx % rh)).astype(jnp.float32) / hf   # (res_i, res_u)
    v_idx = jnp.arange(res)[:, None]
    j_idx = jnp.arange(res)[None, :]
    Pw = ((v_idx // wf) == (j_idx % rw)).astype(jnp.float32) / wf   # (res_v, res_j)
    return jnp.kron(Ph.T, Pw)                                       # (res^2, res^2)


def _build_range_expand(res, rh, rw, n_rw, n_ranges, nr_pad):
    i = jnp.arange(res)[:, None]
    j = jnp.arange(res)[None, :]
    r_of_p = ((i // rh) * n_rw + (j // rw)).reshape(-1)             # (res^2,)
    return (jnp.arange(nr_pad)[:, None] == r_of_p[None, :]).astype(jnp.float32)


# --------------------------------------------------------------------------
# Collage decode kernel: TM images per block, decode_steps fully unrolled,
# one bf16 (TM, P) @ (P, P) matmul + f32 elementwise affine per step.
# --------------------------------------------------------------------------
def _collage_decode_kernel(T_ref, E_ref, z_ref, w_ref, b_ref, out_ref, *, decode_steps):
    E = E_ref[...]                                                    # (NRp, P) bf16
    # Expand compact per-range weight/bias to per-pixel images once per block.
    w = jnp.dot(w_ref[...], E, preferred_element_type=jnp.float32)   # (TM, P) f32
    b = jnp.dot(b_ref[...], E, preferred_element_type=jnp.float32)   # (TM, P) f32
    T = T_ref[...]                                                    # (P, P)  bf16
    z = z_ref[...]                                                    # (TM, P) bf16
    for _ in range(decode_steps):   # short fixed trip-count -> fully unrolled
        zf = jnp.dot(z, T, preferred_element_type=jnp.float32) * w + b
        z = zf.astype(jnp.bfloat16)
    out_ref[...] = z


# --------------------------------------------------------------------------
# NeuralCollageOperator2d.forward
# --------------------------------------------------------------------------
def neural_collage_forward(x, w_net, b_net, z0=None, *, res, rh, rw,
                           decode_steps=10, block_m=1024):
    B, C, H, W = x.shape
    assert H == res and W == res

    dh = dw = res          # CollageOperator2d defaults
    n_aug = 1              # use_augmentations=False -> n_aug_transforms = 1
    (_, _, n_rh, n_rw, hf, wf, n_domains, n_ranges) = collage_partition_info(
        res, dh, dw, rh, rw, n_aug)
    co_w_dim = n_domains * n_ranges * C
    co_bias_dim = n_ranges * C

    # ---- net: collage code (Pallas matmul+bias head) ----
    x_flat = x.reshape(B, C * H * W).astype(jnp.float32)
    co_code = linear_head(x_flat, w_net, b_net)           # (B, co_w_dim + co_bias_dim)
    co_w = co_code[:, :co_w_dim].reshape(B, C, n_domains, n_ranges)
    co_bias = co_code[:, co_w_dim:].reshape(B, C, n_ranges)

    # ---- collage operator: random init + decode loop (Pallas kernel) ----
    if z0 is None:
        z0 = jax.random.normal(jax.random.PRNGKey(0), (B, C, H, W), dtype=jnp.float32)

    M = B * C
    P = res * res
    NRp = _round_up(n_ranges, 128)

    # broadcast-einsum over the single pooled domain == sum over the domain axis
    w_c = co_w.sum(axis=2).reshape(M, n_ranges)            # compact per-range weight
    b_c = jnp.tanh(co_bias).reshape(M, n_ranges)           # compact per-range bias
    z0_flat = z0.reshape(M, P)

    # TM selection: big lane-dense blocks; >=2 grid steps when possible (v7x 2 TCs);
    # bf16 working set at TM=1024 is ~8 MiB, within v5e's 16 MiB scoped default.
    Mp8 = _round_up(M, 8)
    if Mp8 <= 16:
        TM = Mp8
    else:
        TM = min(block_m, _round_up(Mp8, 16))
        if _round_up(Mp8, TM) // TM < 2:
            TM = max(16, _round_up(Mp8 // 2, 16))
    Mp = _round_up(M, TM)

    # compact bf16 operands (MXU-native inputs, halved HBM/VMEM traffic)
    z_in = jnp.pad(z0_flat, ((0, Mp - M), (0, 0))).astype(jnp.bfloat16)
    w_in = jnp.pad(w_c, ((0, Mp - M), (0, NRp - n_ranges))).astype(jnp.bfloat16)
    b_in = jnp.pad(b_c, ((0, Mp - M), (0, NRp - n_ranges))).astype(jnp.bfloat16)

    T = _build_collage_operator(res, rh, rw, hf, wf).astype(jnp.bfloat16)       # (P, P)
    E = _build_range_expand(res, rh, rw, n_rw, n_ranges, NRp).astype(jnp.bfloat16)

    kernel = functools.partial(_collage_decode_kernel, decode_steps=decode_steps)

    flops = 2 * decode_steps * Mp * P * P + 2 * 2 * Mp * NRp * P
    bytes_accessed = 2 * (2 * Mp * P + 2 * Mp * NRp + P * P + NRp * P)   # bf16 streams

    z = pl.pallas_call(
        kernel,
        out_shape=jax.ShapeDtypeStruct((Mp, P), jnp.bfloat16),
        grid_spec=pltpu.PrefetchScalarGridSpec(
            num_scalar_prefetch=0,
            grid=(Mp // TM,),
            in_specs=[
                pl.BlockSpec((P, P), lambda m: (0, 0)),      # T: grid-constant, DMA'd once
                pl.BlockSpec((NRp, P), lambda m: (0, 0)),    # E: grid-constant, DMA'd once
                pl.BlockSpec((TM, P), lambda m: (m, 0)),     # z0 block (bf16)
                pl.BlockSpec((TM, NRp), lambda m: (m, 0)),   # compact weight
                pl.BlockSpec((TM, NRp), lambda m: (m, 0)),   # compact bias
            ],
            out_specs=pl.BlockSpec((TM, P), lambda m: (m, 0)),
        ),
        compiler_params=pltpu.CompilerParams(
            dimension_semantics=("parallel",)),
        input_output_aliases={2: 0},   # z0 buffer is dead after the kernel -> reuse it
        cost_estimate=pl.CostEstimate(flops=int(flops), transcendentals=0,
                                      bytes_accessed=int(bytes_accessed)),
    )(T, E, z_in, w_in, b_in)

    return z[:M].astype(jnp.float32).reshape(B, C, H, W), co_w, co_bias


# --------------------------------------------------------------------------
# Pure-JAX reference for the decode loop (mirrors the PyTorch ops directly).
# --------------------------------------------------------------------------
def reference_decode(z0, co_w, co_bias, decode_steps, res, rh, rw, n_rh, n_rw, hf, wf):
    B, C = co_w.shape[:2]
    bias = jnp.tanh(co_bias)               # (B, C, n_ranges)
    w_eff = co_w.sum(axis=2)               # broadcast-einsum over the domain axis
    z = z0
    for _ in range(decode_steps):
        # single domain = whole image; AvgPool3d((1, hf, wf))
        pooled = z.reshape(B, C, rh, hf, rw, wf).mean(axis=(3, 5))        # (B,C,rh,rw)
        rng = pooled[:, :, None] * w_eff[..., None, None] \
            + bias[..., None, None]                                       # (B,C,R,rh,rw)
        # patches_to_img, row-major range ordering
        z = rng.reshape(B, C, n_rh, n_rw, rh, rw).transpose(0, 1, 2, 4, 3, 5) \
               .reshape(B, C, res, res)
    return z


if __name__ == "__main__":
    key = jax.random.PRNGKey(0)
    k_x, k_w, k_b, k_z = jax.random.split(key, 4)

    # Small config consistent with the module: out_res=16, out_channels=4, rh=rw=4
    B, out_channels, out_res, rh, rw = 2, 4, 16, 4, 4
    decode_steps = 10

    (_, _, n_rh, n_rw, hf, wf, n_domains, n_ranges) = collage_partition_info(
        out_res, out_res, out_res, rh, rw, 1)
    co_w_dim = n_domains * n_ranges * out_channels
    co_bias_dim = n_ranges * out_channels
    tot_out_dim = co_w_dim + co_bias_dim

    # Deterministic parameters for the stand-in linear "net"
    in_dim = out_channels * out_res * out_res
    w_net = 0.005 * jax.random.normal(k_w, (in_dim, tot_out_dim), dtype=jnp.float32)
    b_net = 0.01 * jax.random.normal(k_b, (tot_out_dim,), dtype=jnp.float32)

    x = jax.random.normal(k_x, (B, out_channels, out_res, out_res), dtype=jnp.float32)
    z0 = jax.random.normal(k_z, (B, out_channels, out_res, out_res), dtype=jnp.float32)

    fwd = jax.jit(functools.partial(
        neural_collage_forward, res=out_res, rh=rh, rw=rw, decode_steps=decode_steps))
    z, co_w, co_bias = fwd(x, w_net, b_net, z0)
    z = jax.block_until_ready(z)
    assert z.shape == (B, out_channels, out_res, out_res)

    # correctness check against a pure-JAX reference of the decode loop
    z_ref = reference_decode(z0, co_w, co_bias, decode_steps,
                             out_res, rh, rw, n_rh, n_rw, hf, wf)
    rel_err = jnp.max(jnp.abs(z - z_ref)) / (jnp.max(jnp.abs(z_ref)) + 1e-6)
    assert rel_err < 5e-2, f"kernel/reference mismatch, rel_err={rel_err}"

    print("KERNEL_OK")
</pallas_src>

<mosaic_0001>
module attributes {stable_mosaic.version = 11 : i64} {
  func.func @_linear_head_kernel(%arg0: i32, %arg1: i32, %arg2: memref<8x1024xbf16, #tpu.memory_space<vmem>>, %arg3: memref<1024x256xbf16, #tpu.memory_space<vmem>>, %arg4: memref<1x256xf32, #tpu.memory_space<vmem>>, %arg5: memref<8x256xf32, #tpu.memory_space<vmem>>) attributes {dimension_semantics = [#tpu.dimension_semantics<parallel>, #tpu.dimension_semantics<parallel>], iteration_bounds = array<i64: 1, 1>, scalar_prefetch = 0 : i64, scratch_operands = 0 : i64, tpu.core_type = #tpu.core_type<tc>, window_params = [{transform_indices = @transform_0, window_bounds = array<i64: 8, 1024>}, {transform_indices = @transform_1, window_bounds = array<i64: 1024, 256>}, {transform_indices = @transform_2, window_bounds = array<i64: 1, 256>}, {transform_indices = @transform_3, window_bounds = array<i64: 8, 256>}]} {
    %c0 = arith.constant 0 : index
    %c0_0 = arith.constant 0 : index
    %0 = vector.load %arg2[%c0, %c0_0] : memref<8x1024xbf16, #tpu.memory_space<vmem>>, vector<8x1024xbf16>
    %c0_1 = arith.constant 0 : index
    %c0_2 = arith.constant 0 : index
    %1 = vector.load %arg3[%c0_1, %c0_2] : memref<1024x256xbf16, #tpu.memory_space<vmem>>, vector<1024x256xbf16>
    %cst = arith.constant dense<0.000000e+00> : vector<8x256xf32>
    %2 = tpu.matmul %0, %1, %cst {dimension_numbers = #tpu.dot_dimension_numbers<[1], [0], [0], [1], [0, 0, 1, 1], [], []>} : vector<8x1024xbf16>, vector<1024x256xbf16>, vector<8x256xf32> -> vector<8x256xf32>
    %c0_3 = arith.constant 0 : index
    %c0_4 = arith.constant 0 : index
    %3 = vector.load %arg4[%c0_3, %c0_4] : memref<1x256xf32, #tpu.memory_space<vmem>>, vector<1x256xf32>
    %4 = vector.broadcast %3 : vector<1x256xf32> to vector<8x256xf32>
    %5 = arith.addf %2, %4 : vector<8x256xf32>
    %c0_5 = arith.constant 0 : index
    %c0_6 = arith.constant 0 : index
    %6 = vector.load %arg5[%c0_5, %c0_6] : memref<8x256xf32, #tpu.memory_space<vmem>>, vector<8x256xf32>
    tpu.vector_store %arg5[%c0_5, %c0_6], %5 {strides = array<i32>} : memref<8x256xf32, #tpu.memory_space<vmem>>, vector<8x256xf32>,
    return
  }
  func.func @transform_0(%arg0: i32, %arg1: i32) -> (i32, i32) {
    %c0_i32 = arith.constant 0 : i32
    %c0_i32_0 = arith.constant 0 : i32
    return %arg0, %c0_i32 : i32, i32
  }
  func.func @transform_1(%arg0: i32, %arg1: i32) -> (i32, i32) {
    %c0_i32 = arith.constant 0 : i32
    %c0_i32_0 = arith.constant 0 : i32
    return %c0_i32, %arg1 : i32, i32
  }
  func.func @transform_2(%arg0: i32, %arg1: i32) -> (i32, i32) {
    %c0_i32 = arith.constant 0 : i32
    %c0_i32_0 = arith.constant 0 : i32
    return %c0_i32, %arg1 : i32, i32
  }
  func.func @transform_3(%arg0: i32, %arg1: i32) -> (i32, i32) {
    %c0_i32 = arith.constant 0 : i32
    return %arg0, %arg1 : i32, i32
  }
}

module attributes {stable_mosaic.version = 11 : i64} {
  func.func @_collage_decode_kernel(%arg0: i32, %arg1: memref<256x256xbf16, #tpu.memory_space<vmem>>, %arg2: memref<128x256xbf16, #tpu.memory_space<vmem>>, %arg3: memref<8x256xbf16, #tpu.memory_space<vmem>>, %arg4: memref<8x128xbf16, #tpu.memory_space<vmem>>, %arg5: memref<8x128xbf16, #tpu.memory_space<vmem>>, %arg6: memref<8x256xbf16, #tpu.memory_space<vmem>>) attributes {dimension_semantics = [#tpu.dimension_semantics<parallel>], iteration_bounds = array<i64: 1>, scalar_prefetch = 0 : i64, scratch_operands = 0 : i64, tpu.core_type = #tpu.core_type<tc>, window_params = [{pipeline_mode = #tpu.pipeline_mode<synchronous>, transform_indices = @transform_0, window_bounds = array<i64: 256, 256>}, {pipeline_mode = #tpu.pipeline_mode<synchronous>, transform_indices = @transform_1, window_bounds = array<i64: 128, 256>}, {transform_indices = @transform_2, window_bounds = array<i64: 8, 256>}, {transform_indices = @transform_3, window_bounds = array<i64: 8, 128>}, {transform_indices = @transform_4, window_bounds = array<i64: 8, 128>}, {transform_indices = @transform_5, window_bounds = array<i64: 8, 256>}]} {
    %c0 = arith.constant 0 : index
    %c0_0 = arith.constant 0 : index
    %0 = vector.load %arg2[%c0, %c0_0] : memref<128x256xbf16, #tpu.memory_space<vmem>>, vector<128x256xbf16>
    %c0_1 = arith.constant 0 : index
    %c0_2 = arith.constant 0 : index
    %1 = vector.load %arg4[%c0_1, %c0_2] : memref<8x128xbf16, #tpu.memory_space<vmem>>, vector<8x128xbf16>
    %cst = arith.constant dense<0.000000e+00> : vector<8x256xf32>
    %2 = tpu.matmul %1, %0, %cst {dimension_numbers = #tpu.dot_dimension_numbers<[1], [0], [0], [1], [0, 0, 1, 1], [], []>} : vector<8x128xbf16>, vector<128x256xbf16>, vector<8x256xf32> -> vector<8x256xf32>
    %c0_3 = arith.constant 0 : index
    %c0_4 = arith.constant 0 : index
    %3 = vector.load %arg5[%c0_3, %c0_4] : memref<8x128xbf16, #tpu.memory_space<vmem>>, vector<8x128xbf16>
    %cst_5 = arith.constant dense<0.000000e+00> : vector<8x256xf32>
    %4 = tpu.matmul %3, %0, %cst_5 {dimension_numbers = #tpu.dot_dimension_numbers<[1], [0], [0], [1], [0, 0, 1, 1], [], []>} : vector<8x128xbf16>, vector<128x256xbf16>, vector<8x256xf32> -> vector<8x256xf32>
    %c0_6 = arith.constant 0 : index
    %c0_7 = arith.constant 0 : index
    %5 = vector.load %arg1[%c0_6, %c0_7] : memref<256x256xbf16, #tpu.memory_space<vmem>>, vector<256x256xbf16>
    %c0_8 = arith.constant 0 : index
    %c0_9 = arith.constant 0 : index
    %6 = vector.load %arg3[%c0_8, %c0_9] : memref<8x256xbf16, #tpu.memory_space<vmem>>, vector<8x256xbf16>
    %cst_10 = arith.constant dense<0.000000e+00> : vector<8x256xf32>
    %7 = tpu.matmul %6, %5, %cst_10 {dimension_numbers = #tpu.dot_dimension_numbers<[1], [0], [0], [1], [0, 0, 1, 1], [], []>} : vector<8x256xbf16>, vector<256x256xbf16>, vector<8x256xf32> -> vector<8x256xf32>
    %8 = arith.mulf %7, %2 : vector<8x256xf32>
    %9 = arith.addf %8, %4 : vector<8x256xf32>
    %10 = arith.truncf %9 : vector<8x256xf32> to vector<8x256xbf16>
    %cst_11 = arith.constant dense<0.000000e+00> : vector<8x256xf32>
    %11 = tpu.matmul %10, %5, %cst_11 {dimension_numbers = #tpu.dot_dimension_numbers<[1], [0], [0], [1], [0, 0, 1, 1], [], []>} : vector<8x256xbf16>, vector<256x256xbf16>, vector<8x256xf32> -> vector<8x256xf32>
    %12 = arith.mulf %11, %2 : vector<8x256xf32>
    %13 = arith.addf %12, %4 : vector<8x256xf32>
    %14 = arith.truncf %13 : vector<8x256xf32> to vector<8x256xbf16>
    %cst_12 = arith.constant dense<0.000000e+00> : vector<8x256xf32>
    %15 = tpu.matmul %14, %5, %cst_12 {dimension_numbers = #tpu.dot_dimension_numbers<[1], [0], [0], [1], [0, 0, 1, 1], [], []>} : vector<8x256xbf16>, vector<256x256xbf16>, vector<8x256xf32> -> vector<8x256xf32>
    %16 = arith.mulf %15, %2 : vector<8x256xf32>
    %17 = arith.addf %16, %4 : vector<8x256xf32>
    %18 = arith.truncf %17 : vector<8x256xf32> to vector<8x256xbf16>
    %cst_13 = arith.constant dense<0.000000e+00> : vector<8x256xf32>
    %19 = tpu.matmul %18, %5, %cst_13 {dimension_numbers = #tpu.dot_dimension_numbers<[1], [0], [0], [1], [0, 0, 1, 1], [], []>} : vector<8x256xbf16>, vector<256x256xbf16>, vector<8x256xf32> -> vector<8x256xf32>
    %20 = arith.mulf %19, %2 : vector<8x256xf32>
    %21 = arith.addf %20, %4 : vector<8x256xf32>
    %22 = arith.truncf %21 : vector<8x256xf32> to vector<8x256xbf16>
    %cst_14 = arith.constant dense<0.000000e+00> : vector<8x256xf32>
    %23 = tpu.matmul %22, %5, %cst_14 {dimension_numbers = #tpu.dot_dimension_numbers<[1], [0], [0], [1], [0, 0, 1, 1], [], []>} : vector<8x256xbf16>, vector<256x256xbf16>, vector<8x256xf32> -> vector<8x256xf32>
    %24 = arith.mulf %23, %2 : vector<8x256xf32>
    %25 = arith.addf %24, %4 : vector<8x256xf32>
    %26 = arith.truncf %25 : vector<8x256xf32> to vector<8x256xbf16>
    %cst_15 = arith.constant dense<0.000000e+00> : vector<8x256xf32>
    %27 = tpu.matmul %26, %5, %cst_15 {dimension_numbers = #tpu.dot_dimension_numbers<[1], [0], [0], [1], [0, 0, 1, 1], [], []>} : vector<8x256xbf16>, vector<256x256xbf16>, vector<8x256xf32> -> vector<8x256xf32>
    %28 = arith.mulf %27, %2 : vector<8x256xf32>
    %29 = arith.addf %28, %4 : vector<8x256xf32>
    %30 = arith.truncf %29 : vector<8x256xf32> to vector<8x256xbf16>
    %cst_16 = arith.constant dense<0.000000e+00> : vector<8x256xf32>
    %31 = tpu.matmul %30, %5, %cst_16 {dimension_numbers = #tpu.dot_dimension_numbers<[1], [0], [0], [1], [0, 0, 1, 1], [], []>} : vector<8x256xbf16>, vector<256x256xbf16>, vector<8x256xf32> -> vector<8x256xf32>
    %32 = arith.mulf %31, %2 : vector<8x256xf32>
    %33 = arith.addf %32, %4 : vector<8x256xf32>
    %34 = arith.truncf %33 : vector<8x256xf32> to vector<8x256xbf16>
    %cst_17 = arith.constant dense<0.000000e+00> : vector<8x256xf32>
    %35 = tpu.matmul %34, %5, %cst_17 {dimension_numbers = #tpu.dot_dimension_numbers<[1], [0], [0], [1], [0, 0, 1, 1], [], []>} : vector<8x256xbf16>, vector<256x256xbf16>, vector<8x256xf32> -> vector<8x256xf32>
    %36 = arith.mulf %35, %2 : vector<8x256xf32>
    %37 = arith.addf %36, %4 : vector<8x256xf32>
    %38 = arith.truncf %37 : vector<8x256xf32> to vector<8x256xbf16>
    %cst_18 = arith.constant dense<0.000000e+00> : vector<8x256xf32>
    %39 = tpu.matmul %38, %5, %cst_18 {dimension_numbers = #tpu.dot_dimension_numbers<[1], [0], [0], [1], [0, 0, 1, 1], [], []>} : vector<8x256xbf16>, vector<256x256xbf16>, vector<8x256xf32> -> vector<8x256xf32>
    %40 = arith.mulf %39, %2 : vector<8x256xf32>
    %41 = arith.addf %40, %4 : vector<8x256xf32>
    %42 = arith.truncf %41 : vector<8x256xf32> to vector<8x256xbf16>
    %cst_19 = arith.constant dense<0.000000e+00> : vector<8x256xf32>
    %43 = tpu.matmul %42, %5, %cst_19 {dimension_numbers = #tpu.dot_dimension_numbers<[1], [0], [0], [1], [0, 0, 1, 1], [], []>} : vector<8x256xbf16>, vector<256x256xbf16>, vector<8x256xf32> -> vector<8x256xf32>
    %44 = arith.mulf %43, %2 : vector<8x256xf32>
    %45 = arith.addf %44, %4 : vector<8x256xf32>
    %46 = arith.truncf %45 : vector<8x256xf32> to vector<8x256xbf16>
    %c0_20 = arith.constant 0 : index
    %c0_21 = arith.constant 0 : index
    %47 = vector.load %arg6[%c0_20, %c0_21] : memref<8x256xbf16, #tpu.memory_space<vmem>>, vector<8x256xbf16>
    tpu.vector_store %arg6[%c0_20, %c0_21], %46 {strides = array<i32>} : memref<8x256xbf16, #tpu.memory_space<vmem>>, vector<8x256xbf16>,
    return
  }
  func.func @transform_0(%arg0: i32) -> (i32, i32) {
    %c0_i32 = arith.constant 0 : i32
    %c0_i32_0 = arith.constant 0 : i32
    %c0_i32_1 = arith.constant 0 : i32
    return %c0_i32, %c0_i32_0 : i32, i32
  }
  func.func @transform_1(%arg0: i32) -> (i32, i32) {
    %c0_i32 = arith.constant 0 : i32
    %c0_i32_0 = arith.constant 0 : i32
    %c0_i32_1 = arith.constant 0 : i32
    return %c0_i32, %c0_i32_0 : i32, i32
  }
  func.func @transform_2(%arg0: i32) -> (i32, i32) {
    %c0_i32 = arith.constant 0 : i32
    %c0_i32_0 = arith.constant 0 : i32
    return %arg0, %c0_i32 : i32, i32
  }
  func.func @transform_3(%arg0: i32) -> (i32, i32) {
    %c0_i32 = arith.constant 0 : i32
    %c0_i32_0 = arith.constant 0 : i32
    return %arg0, %c0_i32 : i32, i32
  }
  func.func @transform_4(%arg0: i32) -> (i32, i32) {
    %c0_i32 = arith.constant 0 : i32
    %c0_i32_0 = arith.constant 0 : i32
    return %arg0, %c0_i32 : i32, i32
  }
  func.func @transform_5(%arg0: i32) -> (i32, i32) {
    %c0_i32 = arith.constant 0 : i32
    %c0_i32_0 = arith.constant 0 : i32
    return %arg0, %c0_i32 : i32, i32
  }
}

</mosaic_0001>

<llo_original>
// kernel: neural_collage_forward.2
$region0: #{neural_collage_forward.2}
  #allocation0 [shape = 'u32[]', space=smem, size = 0x4, offset = 0x4, fixed_abs, tag = 'smem constant byte address 0x4 - core index']
  #allocation1 [shape = 'u32[72,128]{1,0:T(1,128)}', space=vmem, size = 0x9000, scoped, tag = 'internal scratch']
  %s0 = inlined_call_operand.vmem [shape: bf16[8,1024], index: 0, kind: input, shape index: {}]
  %s1 = inlined_call_operand.vmem [shape: bf16[1024,256], index: 1, kind: input, shape index: {}]
  %s2 = inlined_call_operand.vmem [shape: f32[1,256], index: 2, kind: input, shape index: {}]
  %s3 = inlined_call_operand.vmem [shape: f32[8,256], index: 3, kind: output, shape index: {}]
  %s4 = sld [smem:[#allocation0]]
  $region22: #{neural_collage_forward.2} parent=0
    _
  %s6 = ssub.s32 1, %s4
  %s7 = scalar_select 0, %s6, %s4
  // Predicated region
  $region2: #{neural_collage_forward.2} parent=0 // pred_check
    _
  $region3: #{neural_collage_forward.2} parent=0 // pred_check_branch
    %9 = sbr.rel (0) target = $region5
  $region4: #{neural_collage_forward.2} parent=0 // pred_region
    _
  $region5: #{neural_collage_forward.2} parent=0 // pred_fallthru
    _
  // Predicated region
  $region6: #{neural_collage_forward.2} parent=0 // pred_check
    _
  $region7: #{neural_collage_forward.2} parent=0 // pred_check_branch
    %11 = sbr.rel (0) target = $region9
  $region8: #{neural_collage_forward.2} parent=0 // pred_region
    _
  $region9: #{neural_collage_forward.2} parent=0 // pred_fallthru
    _
  // Predicated region
  $region10: #{neural_collage_forward.2} parent=0 // pred_check
    _
  $region11: #{neural_collage_forward.2} parent=0 // pred_check_branch
    %13 = sbr.rel (0) target = $region13
  $region12: #{neural_collage_forward.2} parent=0 // pred_region
    _
  $region13: #{neural_collage_forward.2} parent=0 // pred_fallthru
    _
  %v14 = vld [vmem:[%s0] sm:$0xff]
  %v15 = vld [vmem:[%s0 + $0x8] sm:$0xff]
  %v16 = vld [vmem:[%s0 + $0x10] sm:$0xff]
  %v17 = vld [vmem:[%s0 + $0x18] sm:$0xff]
  %v18 = vld [vmem:[%s1] sm:$0xff]
  %v19 = vld [vmem:[%s1 + $0x8] sm:$0xff]
  %v20 = vld [vmem:[%s1 + $0x10] sm:$0xff]
  %v21 = vld [vmem:[%s1 + $0x18] sm:$0xff]
  %v22 = vld [vmem:[%s1 + $0x20] sm:$0xff]
  %v23 = vld [vmem:[%s1 + $0x28] sm:$0xff]
  %v24 = vld [vmem:[%s1 + $0x30] sm:$0xff]
  %v25 = vld [vmem:[%s1 + $0x38] sm:$0xff]
  %v26 = vld [vmem:[%s1 + $0x40] sm:$0xff]
  %v27 = vld [vmem:[%s1 + $0x48] sm:$0xff]
  %v28 = vld [vmem:[%s1 + $0x50] sm:$0xff]
  %v29 = vld [vmem:[%s1 + $0x58] sm:$0xff]
  %v30 = vld [vmem:[%s1 + $0x60] sm:$0xff]
  %v31 = vld [vmem:[%s1 + $0x68] sm:$0xff]
  %v32 = vld [vmem:[%s1 + $0x70] sm:$0xff]
  %v33 = vld [vmem:[%s1 + $0x78] sm:$0xff]
  %v34 = vld [vmem:[%s1 + $0x80] sm:$0xff]
  %v35 = vld [vmem:[%s1 + $0x88] sm:$0xff]
  %v36 = vld [vmem:[%s1 + $0x90] sm:$0xff]
  %v37 = vld [vmem:[%s1 + $0x98] sm:$0xff]
  %v38 = vld [vmem:[%s1 + $0xa0] sm:$0xff]
  %v39 = vld [vmem:[%s1 + $0xa8] sm:$0xff]
  %v40 = vld [vmem:[%s1 + $0xb0] sm:$0xff]
  %v41 = vld [vmem:[%s1 + $0xb8] sm:$0xff]
  %v42 = vld [vmem:[%s1 + $0xc0] sm:$0xff]
  %v43 = vld [vmem:[%s1 + $0xc8] sm:$0xff]
  %v44 = vld [vmem:[%s1 + $0xd0] sm:$0xff]
  %v45 = vld [vmem:[%s1 + $0xd8] sm:$0xff]
  %v46 = vld [vmem:[%s1 + $0xe0] sm:$0xff]
  %v47 = vld [vmem:[%s1 + $0xe8] sm:$0xff]
  %v48 = vld [vmem:[%s1 + $0xf0] sm:$0xff]
  %v49 = vld [vmem:[%s1 + $0xf8] sm:$0xff]
  %v50 = vld [vmem:[%s1 + $0x100] sm:$0xff]
  %v51 = vld [vmem:[%s1 + $0x108] sm:$0xff]
  %v52 = vld [vmem:[%s1 + $0x110] sm:$0xff]
  %v53 = vld [vmem:[%s1 + $0x118] sm:$0xff]
  %v54 = vld [vmem:[%s1 + $0x120] sm:$0xff]
  %v55 = vld [vmem:[%s1 + $0x128] sm:$0xff]
  %v56 = vld [vmem:[%s1 + $0x130] sm:$0xff]
  %v57 = vld [vmem:[%s1 + $0x138] sm:$0xff]
  %v58 = vld [vmem:[%s1 + $0x140] sm:$0xff]
  %v59 = vld [vmem:[%s1 + $0x148] sm:$0xff]
  %v60 = vld [vmem:[%s1 + $0x150] sm:$0xff]
  %v61 = vld [vmem:[%s1 + $0x158] sm:$0xff]
  %v62 = vld [vmem:[%s1 + $0x160] sm:$0xff]
  %v63 = vld [vmem:[%s1 + $0x168] sm:$0xff]
  %v64 = vld [vmem:[%s1 + $0x170] sm:$0xff]
  %v65 = vld [vmem:[%s1 + $0x178] sm:$0xff]
  %v66 = vld [vmem:[%s1 + $0x180] sm:$0xff]
  %v67 = vld [vmem:[%s1 + $0x188] sm:$0xff]
  %v68 = vld [vmem:[%s1 + $0x190] sm:$0xff]
  %v69 = vld [vmem:[%s1 + $0x198] sm:$0xff]
  %v70 = vld [vmem:[%s1 + $0x1a0] sm:$0xff]
  %v71 = vld [vmem:[%s1 + $0x1a8] sm:$0xff]
  %v72 = vld [vmem:[%s1 + $0x1b0] sm:$0xff]
  %v73 = vld [vmem:[%s1 + $0x1b8] sm:$0xff]
  %v74 = vld [vmem:[%s1 + $0x1c0] sm:$0xff]
  %v75 = vld [vmem:[%s1 + $0x1c8] sm:$0xff]
  %v76 = vld [vmem:[%s1 + $0x1d0] sm:$0xff]
  %v77 = vld [vmem:[%s1 + $0x1d8] sm:$0xff]
  %v78 = vld [vmem:[%s1 + $0x1e0] sm:$0xff]
  %v79 = vld [vmem:[%s1 + $0x1e8] sm:$0xff]
  %v80 = vld [vmem:[%s1 + $0x1f0] sm:$0xff]
  %v81 = vld [vmem:[%s1 + $0x1f8] sm:$0xff]
  %v82 = vld [vmem:[%s1 + $0x200] sm:$0xff]
  %v83 = vld [vmem:[%s1 + $0x208] sm:$0xff]
  %v84 = vld [vmem:[%s1 + $0x210] sm:$0xff]
  %v85 = vld [vmem:[%s1 + $0x218] sm:$0xff]
  %v86 = vld [vmem:[%s1 + $0x220] sm:$0xff]
  %v87 = vld [vmem:[%s1 + $0x228] sm:$0xff]
  %v88 = vld [vmem:[%s1 + $0x230] sm:$0xff]
  %v89 = vld [vmem:[%s1 + $0x238] sm:$0xff]
  %v90 = vld [vmem:[%s1 + $0x240] sm:$0xff]
  %v91 = vld [vmem:[%s1 + $0x248] sm:$0xff]
  %v92 = vld [vmem:[%s1 + $0x250] sm:$0xff]
  %v93 = vld [vmem:[%s1 + $0x258] sm:$0xff]
  %v94 = vld [vmem:[%s1 + $0x260] sm:$0xff]
  %v95 = vld [vmem:[%s1 + $0x268] sm:$0xff]
  %v96 = vld [vmem:[%s1 + $0x270] sm:$0xff]
  %v97 = vld [vmem:[%s1 + $0x278] sm:$0xff]
  %v98 = vld [vmem:[%s1 + $0x280] sm:$0xff]
  %v99 = vld [vmem:[%s1 + $0x288] sm:$0xff]
  %v100 = vld [vmem:[%s1 + $0x290] sm:$0xff]
  %v101 = vld [vmem:[%s1 + $0x298] sm:$0xff]
  %v102 = vld [vmem:[%s1 + $0x2a0] sm:$0xff]
  %v103 = vld [vmem:[%s1 + $0x2a8] sm:$0xff]
  %v104 = vld [vmem:[%s1 + $0x2b0] sm:$0xff]
  %v105 = vld [vmem:[%s1 + $0x2b8] sm:$0xff]
  %v106 = vld [vmem:[%s1 + $0x2c0] sm:$0xff]
  %v107 = vld [vmem:[%s1 + $0x2c8] sm:$0xff]
  %v108 = vld [vmem:[%s1 + $0x2d0] sm:$0xff]
  %v109 = vld [vmem:[%s1 + $0x2d8] sm:$0xff]
  %v110 = vld [vmem:[%s1 + $0x2e0] sm:$0xff]
  %v111 = vld [vmem:[%s1 + $0x2e8] sm:$0xff]
  %v112 = vld [vmem:[%s1 + $0x2f0] sm:$0xff]
  %v113 = vld [vmem:[%s1 + $0x2f8] sm:$0xff]
  %v114 = vld [vmem:[%s1 + $0x300] sm:$0xff]
  %v115 = vld [vmem:[%s1 + $0x308] sm:$0xff]
  %v116 = vld [vmem:[%s1 + $0x310] sm:$0xff]
  %v117 = vld [vmem:[%s1 + $0x318] sm:$0xff]
  %v118 = vld [vmem:[%s1 + $0x320] sm:$0xff]
  %v119 = vld [vmem:[%s1 + $0x328] sm:$0xff]
  %v120 = vld [vmem:[%s1 + $0x330] sm:$0xff]
  %v121 = vld [vmem:[%s1 + $0x338] sm:$0xff]
  %v122 = vld [vmem:[%s1 + $0x340] sm:$0xff]
  %v123 = vld [vmem:[%s1 + $0x348] sm:$0xff]
  %v124 = vld [vmem:[%s1 + $0x350] sm:$0xff]
  %v125 = vld [vmem:[%s1 + $0x358] sm:$0xff]
  %v126 = vld [vmem:[%s1 + $0x360] sm:$0xff]
  %v127 = vld [vmem:[%s1 + $0x368] sm:$0xff]
  %v128 = vld [vmem:[%s1 + $0x370] sm:$0xff]
  %v129 = vld [vmem:[%s1 + $0x378] sm:$0xff]
  %v130 = vld [vmem:[%s1 + $0x380] sm:$0xff]
  %v131 = vld [vmem:[%s1 + $0x388] sm:$0xff]
  %v132 = vld [vmem:[%s1 + $0x390] sm:$0xff]
  %v133 = vld [vmem:[%s1 + $0x398] sm:$0xff]
  %v134 = vld [vmem:[%s1 + $0x3a0] sm:$0xff]
  %v135 = vld [vmem:[%s1 + $0x3a8] sm:$0xff]
  %v136 = vld [vmem:[%s1 + $0x3b0] sm:$0xff]
  %v137 = vld [vmem:[%s1 + $0x3b8] sm:$0xff]
  %v138 = vld [vmem:[%s1 + $0x3c0] sm:$0xff]
  %v139 = vld [vmem:[%s1 + $0x3c8] sm:$0xff]
  %v140 = vld [vmem:[%s1 + $0x3d0] sm:$0xff]
  %v141 = vld [vmem:[%s1 + $0x3d8] sm:$0xff]
  %v142 = vld [vmem:[%s1 + $0x3e0] sm:$0xff]
  %v143 = vld [vmem:[%s1 + $0x3e8] sm:$0xff]
  %v144 = vld [vmem:[%s1 + $0x3f0] sm:$0xff]
  %v145 = vld [vmem:[%s1 + $0x3f8] sm:$0xff]
  %v146 = vld [vmem:[%s2] sm:$0x3]
  %v148 = vperm.slane %v146, 0
  %v149 = vperm.slane %v146, 1
  %v156 = vunpack.c.l.b16 %v14
  %v157 = vunpack.c.h.b16 %v14
  %v158 = vunpack.c.l.b16 %v15
  %v159 = vunpack.c.h.b16 %v15
  %v160 = vunpack.c.l.b16 %v16
  %v161 = vunpack.c.h.b16 %v16
  %v162 = vunpack.c.l.b16 %v17
  %v163 = vunpack.c.h.b16 %v17
  %v164 = vpack.c.b16 %v156, %v156
  %v165 = vpack.c.b16 %v157, %v157
  %v166 = vpack.c.b16 %v158, %v158
  %v167 = vpack.c.b16 %v159, %v159
  %v168 = vpack.c.b16 %v160, %v160
  %v169 = vpack.c.b16 %v161, %v161
  %v170 = vpack.c.b16 %v162, %v162
  %v171 = vpack.c.b16 %v163, %v163
  %v308 = vunpack.c.l.b16 %v18
  %v309 = vunpack.c.h.b16 %v18
  %v310 = vunpack.c.l.b16 %v19
  %v311 = vunpack.c.h.b16 %v19
  %v312 = vunpack.c.l.b16 %v20
  %v313 = vunpack.c.h.b16 %v20
  %v314 = vunpack.c.l.b16 %v21
  %v315 = vunpack.c.h.b16 %v21
  %v316 = vunpack.c.l.b16 %v22
  %v317 = vunpack.c.h.b16 %v22
  %v318 = vunpack.c.l.b16 %v23
  %v319 = vunpack.c.h.b16 %v23
  %v320 = vunpack.c.l.b16 %v24
  %v321 = vunpack.c.h.b16 %v24
  %v322 = vunpack.c.l.b16 %v25
  %v323 = vunpack.c.h.b16 %v25
  %v324 = vunpack.c.l.b16 %v26
  %v325 = vunpack.c.h.b16 %v26
  %v326 = vunpack.c.l.b16 %v27
  %v327 = vunpack.c.h.b16 %v27
  %v328 = vunpack.c.l.b16 %v28
  %v329 = vunpack.c.h.b16 %v28
  %v330 = vunpack.c.l.b16 %v29
  %v331 = vunpack.c.h.b16 %v29
  %v332 = vunpack.c.l.b16 %v30
  %v333 = vunpack.c.h.b16 %v30
  %v334 = vunpack.c.l.b16 %v31
  %v335 = vunpack.c.h.b16 %v31
  %v336 = vunpack.c.l.b16 %v32
  %v337 = vunpack.c.h.b16 %v32
  %v338 = vunpack.c.l.b16 %v33
  %v339 = vunpack.c.h.b16 %v33
  %v340 = vunpack.c.l.b16 %v34
  %v341 = vunpack.c.h.b16 %v34
  %v342 = vunpack.c.l.b16 %v35
  %v343 = vunpack.c.h.b16 %v35
  %v344 = vunpack.c.l.b16 %v36
  %v345 = vunpack.c.h.b16 %v36
  %v346 = vunpack.c.l.b16 %v37
  %v347 = vunpack.c.h.b16 %v37
  %v348 = vunpack.c.l.b16 %v38
  %v349 = vunpack.c.h.b16 %v38
  %v350 = vunpack.c.l.b16 %v39
  %v351 = vunpack.c.h.b16 %v39
  %v352 = vunpack.c.l.b16 %v40
  %v353 = vunpack.c.h.b16 %v40
  %v354 = vunpack.c.l.b16 %v41
  %v355 = vunpack.c.h.b16 %v41
  %v356 = vunpack.c.l.b16 %v42
  %v357 = vunpack.c.h.b16 %v42
  %v358 = vunpack.c.l.b16 %v43
  %v359 = vunpack.c.h.b16 %v43
  %v360 = vunpack.c.l.b16 %v44
  %v361 = vunpack.c.h.b16 %v44
  %v362 = vunpack.c.l.b16 %v45
  %v363 = vunpack.c.h.b16 %v45
  %v364 = vunpack.c.l.b16 %v46
  %v365 = vunpack.c.h.b16 %v46
  %v366 = vunpack.c.l.b16 %v47
  %v367 = vunpack.c.h.b16 %v47
  %v368 = vunpack.c.l.b16 %v48
  %v369 = vunpack.c.h.b16 %v48
  %v370 = vunpack.c.l.b16 %v49
  %v371 = vunpack.c.h.b16 %v49
  %v372 = vunpack.c.l.b16 %v50
  %v373 = vunpack.c.h.b16 %v50
  %v374 = vunpack.c.l.b16 %v51
  %v375 = vunpack.c.h.b16 %v51
  %v376 = vunpack.c.l.b16 %v52
  %v377 = vunpack.c.h.b16 %v52
  %v378 = vunpack.c.l.b16 %v53
  %v379 = vunpack.c.h.b16 %v53
  %v380 = vunpack.c.l.b16 %v54
  %v381 = vunpack.c.h.b16 %v54
  %v382 = vunpack.c.l.b16 %v55
  %v383 = vunpack.c.h.b16 %v55
  %v384 = vunpack.c.l.b16 %v56
  %v385 = vunpack.c.h.b16 %v56
  %v386 = vunpack.c.l.b16 %v57
  %v387 = vunpack.c.h.b16 %v57
  %v388 = vunpack.c.l.b16 %v58
  %v389 = vunpack.c.h.b16 %v58
  %v390 = vunpack.c.l.b16 %v59
  %v391 = vunpack.c.h.b16 %v59
  %v392 = vunpack.c.l.b16 %v60
  %v393 = vunpack.c.h.b16 %v60
  %v394 = vunpack.c.l.b16 %v61
  %v395 = vunpack.c.h.b16 %v61
  %v396 = vunpack.c.l.b16 %v62
  %v397 = vunpack.c.h.b16 %v62
  %v398 = vunpack.c.l.b16 %v63
  %v399 = vunpack.c.h.b16 %v63
  %v400 = vunpack.c.l.b16 %v64
  %v401 = vunpack.c.h.b16 %v64
  %v402 = vunpack.c.l.b16 %v65
  %v403 = vunpack.c.h.b16 %v65
  %v404 = vunpack.c.l.b16 %v66
  %v405 = vunpack.c.h.b16 %v66
  %v406 = vunpack.c.l.b16 %v67
  %v407 = vunpack.c.h.b16 %v67
  %v408 = vunpack.c.l.b16 %v68
  %v409 = vunpack.c.h.b16 %v68
  %v410 = vunpack.c.l.b16 %v69
  %v411 = vunpack.c.h.b16 %v69
  %v412 = vunpack.c.l.b16 %v70
  %v413 = vunpack.c.h.b16 %v70
  %v414 = vunpack.c.l.b16 %v71
  %v415 = vunpack.c.h.b16 %v71
  %v416 = vunpack.c.l.b16 %v72
  %v417 = vunpack.c.h.b16 %v72
  %v418 = vunpack.c.l.b16 %v73
  %v419 = vunpack.c.h.b16 %v73
  %v420 = vunpack.c.l.b16 %v74
  %v421 = vunpack.c.h.b16 %v74
  %v422 = vunpack.c.l.b16 %v75
  %v423 = vunpack.c.h.b16 %v75
  %v424 = vunpack.c.l.b16 %v76
  %v425 = vunpack.c.h.b16 %v76
  %v426 = vunpack.c.l.b16 %v77
  %v427 = vunpack.c.h.b16 %v77
  %v428 = vunpack.c.l.b16 %v78
  %v429 = vunpack.c.h.b16 %v78
  %v430 = vunpack.c.l.b16 %v79
  %v431 = vunpack.c.h.b16 %v79
  %v432 = vunpack.c.l.b16 %v80
  %v433 = vunpack.c.h.b16 %v80
  %v434 = vunpack.c.l.b16 %v81
  %v435 = vunpack.c.h.b16 %v81
  %v436 = vunpack.c.l.b16 %v82
  %v437 = vunpack.c.h.b16 %v82
  %v438 = vunpack.c.l.b16 %v83
  %v439 = vunpack.c.h.b16 %v83
  %v440 = vunpack.c.l.b16 %v84
  %v441 = vunpack.c.h.b16 %v84
  %v442 = vunpack.c.l.b16 %v85
  %v443 = vunpack.c.h.b16 %v85
  %v444 = vunpack.c.l.b16 %v86
  %v445 = vunpack.c.h.b16 %v86
  %v446 = vunpack.c.l.b16 %v87
  %v447 = vunpack.c.h.b16 %v87
  %v448 = vunpack.c.l.b16 %v88
  %v449 = vunpack.c.h.b16 %v88
  %v450 = vunpack.c.l.b16 %v89
  %v451 = vunpack.c.h.b16 %v89
  %v452 = vunpack.c.l.b16 %v90
  %v453 = vunpack.c.h.b16 %v90
  %v454 = vunpack.c.l.b16 %v91
  %v455 = vunpack.c.h.b16 %v91
  %v456 = vunpack.c.l.b16 %v92
  %v457 = vunpack.c.h.b16 %v92
  %v458 = vunpack.c.l.b16 %v93
  %v459 = vunpack.c.h.b16 %v93
  %v460 = vunpack.c.l.b16 %v94
  %v461 = vunpack.c.h.b16 %v94
  %v462 = vunpack.c.l.b16 %v95
  %v463 = vunpack.c.h.b16 %v95
  %v464 = vunpack.c.l.b16 %v96
  %v465 = vunpack.c.h.b16 %v96
  %v466 = vunpack.c.l.b16 %v97
  %v467 = vunpack.c.h.b16 %v97
  %v468 = vunpack.c.l.b16 %v98
  %v469 = vunpack.c.h.b16 %v98
  %v470 = vunpack.c.l.b16 %v99
  %v471 = vunpack.c.h.b16 %v99
  %v472 = vunpack.c.l.b16 %v100
  %v473 = vunpack.c.h.b16 %v100
  %v474 = vunpack.c.l.b16 %v101
  %v475 = vunpack.c.h.b16 %v101
  %v476 = vunpack.c.l.b16 %v102
  %v477 = vunpack.c.h.b16 %v102
  %v478 = vunpack.c.l.b16 %v103
  %v479 = vunpack.c.h.b16 %v103
  %v480 = vunpack.c.l.b16 %v104
  %v481 = vunpack.c.h.b16 %v104
  %v482 = vunpack.c.l.b16 %v105
  %v483 = vunpack.c.h.b16 %v105
  %v484 = vunpack.c.l.b16 %v106
  %v485 = vunpack.c.h.b16 %v106
  %v486 = vunpack.c.l.b16 %v107
  %v487 = vunpack.c.h.b16 %v107
  %v488 = vunpack.c.l.b16 %v108
  %v489 = vunpack.c.h.b16 %v108
  %v490 = vunpack.c.l.b16 %v109
  %v491 = vunpack.c.h.b16 %v109
  %v492 = vunpack.c.l.b16 %v110
  %v493 = vunpack.c.h.b16 %v110
  %v494 = vunpack.c.l.b16 %v111
  %v495 = vunpack.c.h.b16 %v111
  %v496 = vunpack.c.l.b16 %v112
  %v497 = vunpack.c.h.b16 %v112
  %v498 = vunpack.c.l.b16 %v113
  %v499 = vunpack.c.h.b16 %v113
  %v500 = vunpack.c.l.b16 %v114
  %v501 = vunpack.c.h.b16 %v114
  %v502 = vunpack.c.l.b16 %v115
  %v503 = vunpack.c.h.b16 %v115
  %v504 = vunpack.c.l.b16 %v116
  %v505 = vunpack.c.h.b16 %v116
  %v506 = vunpack.c.l.b16 %v117
  %v507 = vunpack.c.h.b16 %v117
  %v508 = vunpack.c.l.b16 %v118
  %v509 = vunpack.c.h.b16 %v118
  %v510 = vunpack.c.l.b16 %v119
  %v511 = vunpack.c.h.b16 %v119
  %v512 = vunpack.c.l.b16 %v120
  %v513 = vunpack.c.h.b16 %v120
  %v514 = vunpack.c.l.b16 %v121
  %v515 = vunpack.c.h.b16 %v121
  %v516 = vunpack.c.l.b16 %v122
  %v517 = vunpack.c.h.b16 %v122
  %v518 = vunpack.c.l.b16 %v123
  %v519 = vunpack.c.h.b16 %v123
  %v520 = vunpack.c.l.b16 %v124
  %v521 = vunpack.c.h.b16 %v124
  %v522 = vunpack.c.l.b16 %v125
  %v523 = vunpack.c.h.b16 %v125
  %v524 = vunpack.c.l.b16 %v126
  %v525 = vunpack.c.h.b16 %v126
  %v526 = vunpack.c.l.b16 %v127
  %v527 = vunpack.c.h.b16 %v127
  %v528 = vunpack.c.l.b16 %v128
  %v529 = vunpack.c.h.b16 %v128
  %v530 = vunpack.c.l.b16 %v129
  %v531 = vunpack.c.h.b16 %v129
  %v532 = vunpack.c.l.b16 %v130
  %v533 = vunpack.c.h.b16 %v130
  %v534 = vunpack.c.l.b16 %v131
  %v535 = vunpack.c.h.b16 %v131
  %v536 = vunpack.c.l.b16 %v132
  %v537 = vunpack.c.h.b16 %v132
  %v538 = vunpack.c.l.b16 %v133
  %v539 = vunpack.c.h.b16 %v133
  %v540 = vunpack.c.l.b16 %v134
  %v541 = vunpack.c.h.b16 %v134
  %v542 = vunpack.c.l.b16 %v135
  %v543 = vunpack.c.h.b16 %v135
  %v544 = vunpack.c.l.b16 %v136
  %v545 = vunpack.c.h.b16 %v136
  %v546 = vunpack.c.l.b16 %v137
  %v547 = vunpack.c.h.b16 %v137
  %v548 = vunpack.c.l.b16 %v138
  %v549 = vunpack.c.h.b16 %v138
  %v550 = vunpack.c.l.b16 %v139
  %v551 = vunpack.c.h.b16 %v139
  %v552 = vunpack.c.l.b16 %v140
  %v553 = vunpack.c.h.b16 %v140
  %v554 = vunpack.c.l.b16 %v141
  %v555 = vunpack.c.h.b16 %v141
  %v556 = vunpack.c.l.b16 %v142
  %v557 = vunpack.c.h.b16 %v142
  %v558 = vunpack.c.l.b16 %v143
  %v559 = vunpack.c.h.b16 %v143
  %v560 = vunpack.c.l.b16 %v144
  %v561 = vunpack.c.h.b16 %v144
  %v562 = vunpack.c.l.b16 %v145
  %v563 = vunpack.c.h.b16 %v145
  %v564 = vpack.c.b16 %v310, %v308
  %v565 = vpack.c.b16 %v311, %v309
  %v566 = vpack.c.b16 %v314, %v312
  %v567 = vpack.c.b16 %v315, %v313
  %v568 = vpack.c.b16 %v318, %v316
  %v569 = vpack.c.b16 %v319, %v317
  %v570 = vpack.c.b16 %v322, %v320
  %v571 = vpack.c.b16 %v323, %v321
  %v572 = vpack.c.b16 %v326, %v324
  %v573 = vpack.c.b16 %v327, %v325
  %v574 = vpack.c.b16 %v330, %v328
  %v575 = vpack.c.b16 %v331, %v329
  %v576 = vpack.c.b16 %v334, %v332
  %v577 = vpack.c.b16 %v335, %v333
  %v578 = vpack.c.b16 %v338, %v336
  %v579 = vpack.c.b16 %v339, %v337
  %v580 = vpack.c.b16 %v342, %v340
  %v581 = vpack.c.b16 %v343, %v341
  %v582 = vpack.c.b16 %v346, %v344
  %v583 = vpack.c.b16 %v347, %v345
  %v584 = vpack.c.b16 %v350, %v348
  %v585 = vpack.c.b16 %v351, %v349
  %v586 = vpack.c.b16 %v354, %v352
  %v587 = vpack.c.b16 %v355, %v353
  %v588 = vpack.c.b16 %v358, %v356
  %v589 = vpack.c.b16 %v359, %v357
  %v590 = vpack.c.b16 %v362, %v360
  %v591 = vpack.c.b16 %v363, %v361
  %v592 = vpack.c.b16 %v366, %v364
  %v593 = vpack.c.b16 %v367, %v365
  %v594 = vpack.c.b16 %v370, %v368
  %v595 = vpack.c.b16 %v371, %v369
  %v596 = vpack.c.b16 %v374, %v372
  %v597 = vpack.c.b16 %v375, %v373
  %v598 = vpack.c.b16 %v378, %v376
  %v599 = vpack.c.b16 %v379, %v377
  %v600 = vpack.c.b16 %v382, %v380
  %v601 = vpack.c.b16 %v383, %v381
  %v602 = vpack.c.b16 %v386, %v384
  %v603 = vpack.c.b16 %v387, %v385
  %v604 = vpack.c.b16 %v390, %v388
  %v605 = vpack.c.b16 %v391, %v389
  %v606 = vpack.c.b16 %v394, %v392
  %v607 = vpack.c.b16 %v395, %v393
  %v608 = vpack.c.b16 %v398, %v396
  %v609 = vpack.c.b16 %v399, %v397
  %v610 = vpack.c.b16 %v402, %v400
  %v611 = vpack.c.b16 %v403, %v401
  %v612 = vpack.c.b16 %v406, %v404
  %v613 = vpack.c.b16 %v407, %v405
  %v614 = vpack.c.b16 %v410, %v408
  %v615 = vpack.c.b16 %v411, %v409
  %v616 = vpack.c.b16 %v414, %v412
  %v617 = vpack.c.b16 %v415, %v413
  %v618 = vpack.c.b16 %v418, %v416
  %v619 = vpack.c.b16 %v419, %v417
  %v620 = vpack.c.b16 %v422, %v420
  %v621 = vpack.c.b16 %v423, %v421
  %v622 = vpack.c.b16 %v426, %v424
  %v623 = vpack.c.b16 %v427, %v425
  %v624 = vpack.c.b16 %v430, %v428
  %v625 = vpack.c.b16 %v431, %v429
  %v626 = vpack.c.b16 %v434, %v432
  %v627 = vpack.c.b16 %v435, %v433
  %v628 = vpack.c.b16 %v438, %v436
  %v629 = vpack.c.b16 %v439, %v437
  %v630 = vpack.c.b16 %v442, %v440
  %v631 = vpack.c.b16 %v443, %v441
  %v632 = vpack.c.b16 %v446, %v444
  %v633 = vpack.c.b16 %v447, %v445
  %v634 = vpack.c.b16 %v450, %v448
  %v635 = vpack.c.b16 %v451, %v449
  %v636 = vpack.c.b16 %v454, %v452
  %v637 = vpack.c.b16 %v455, %v453
  %v638 = vpack.c.b16 %v458, %v456
  %v639 = vpack.c.b16 %v459, %v457
  %v640 = vpack.c.b16 %v462, %v460
  %v641 = vpack.c.b16 %v463, %v461
  %v642 = vpack.c.b16 %v466, %v464
  %v643 = vpack.c.b16 %v467, %v465
  %v644 = vpack.c.b16 %v470, %v468
  %v645 = vpack.c.b16 %v471, %v469
  %v646 = vpack.c.b16 %v474, %v472
  %v647 = vpack.c.b16 %v475, %v473
  %v648 = vpack.c.b16 %v478, %v476
  %v649 = vpack.c.b16 %v479, %v477
  %v650 = vpack.c.b16 %v482, %v480
  %v651 = vpack.c.b16 %v483, %v481
  %v652 = vpack.c.b16 %v486, %v484
  %v653 = vpack.c.b16 %v487, %v485
  %v654 = vpack.c.b16 %v490, %v488
  %v655 = vpack.c.b16 %v491, %v489
  %v656 = vpack.c.b16 %v494, %v492
  %v657 = vpack.c.b16 %v495, %v493
  %v658 = vpack.c.b16 %v498, %v496
  %v659 = vpack.c.b16 %v499, %v497
  %v660 = vpack.c.b16 %v502, %v500
  %v661 = vpack.c.b16 %v503, %v501
  %v662 = vpack.c.b16 %v506, %v504
  %v663 = vpack.c.b16 %v507, %v505
  %v664 = vpack.c.b16 %v510, %v508
  %v665 = vpack.c.b16 %v511, %v509
  %v666 = vpack.c.b16 %v514, %v512
  %v667 = vpack.c.b16 %v515, %v513
  %v668 = vpack.c.b16 %v518, %v516
  %v669 = vpack.c.b16 %v519, %v517
  %v670 = vpack.c.b16 %v522, %v520
  %v671 = vpack.c.b16 %v523, %v521
  %v672 = vpack.c.b16 %v526, %v524
  %v673 = vpack.c.b16 %v527, %v525
  %v674 = vpack.c.b16 %v530, %v528
  %v675 = vpack.c.b16 %v531, %v529
  %v676 = vpack.c.b16 %v534, %v532
  %v677 = vpack.c.b16 %v535, %v533
  %v678 = vpack.c.b16 %v538, %v536
  %v679 = vpack.c.b16 %v539, %v537
  %v680 = vpack.c.b16 %v542, %v540
  %v681 = vpack.c.b16 %v543, %v541
  %v682 = vpack.c.b16 %v546, %v544
  %v683 = vpack.c.b16 %v547, %v545
  %v684 = vpack.c.b16 %v550, %v548
  %v685 = vpack.c.b16 %v551, %v549
  %v686 = vpack.c.b16 %v554, %v552
  %v687 = vpack.c.b16 %v555, %v553
  %v688 = vpack.c.b16 %v558, %v556
  %v689 = vpack.c.b16 %v559, %v557
  %v690 = vpack.c.b16 %v562, %v560
  %v691 = vpack.c.b16 %v563, %v561
  %820 = vmatpush.bf16.msra.mxu0 %v578
  %821 = vmatpush.bf16.msra.mxu0 %v576
  %822 = vmatpush.bf16.msra.mxu0 %v574
  %823 = vmatpush.bf16.msra.mxu0 %v572
  %824 = vmatpush.bf16.msra.mxu0 %v570
  %825 = vmatpush.bf16.msra.mxu0 %v568
  %826 = vmatpush.bf16.msra.mxu0 %v566
  %827 = vmatpush.bf16.msra.mxu0 %v564
  %828 = vmatmul.bf16.gmra.mxu0 %v164
  %v829 = vpop.f32.mrf.mxu0
  %v830 = vadd.f32 %v148, %v829
  %v831 = vpop.f32.mrf.mxu0
  %832 = vdwg.mxu0
  %833 = vmatpush.bf16.msra.mxu0 %v594
  %834 = vmatpush.bf16.msra.mxu0 %v592
  %835 = vmatpush.bf16.msra.mxu0 %v590
  %836 = vmatpush.bf16.msra.mxu0 %v588
  %837 = vmatpush.bf16.msra.mxu0 %v586
  %838 = vmatpush.bf16.msra.mxu0 %v584
  %839 = vmatpush.bf16.msra.mxu0 %v582
  %840 = vmatpush.bf16.msra.mxu0 %v580
  %841 = vmatmul.bf16.gmra.mxu0 %v165
  %v842 = vpop.f32.mrf.mxu0
  %v843 = vadd.f32 %v830, %v842
  %v844 = vpop.f32.mrf.mxu0
  %845 = vdwg.mxu0
  %846 = vmatpush.bf16.msra.mxu0 %v610
  %847 = vmatpush.bf16.msra.mxu0 %v608
  %848 = vmatpush.bf16.msra.mxu0 %v606
  %849 = vmatpush.bf16.msra.mxu0 %v604
  %850 = vmatpush.bf16.msra.mxu0 %v602
  %851 = vmatpush.bf16.msra.mxu0 %v600
  %852 = vmatpush.bf16.msra.mxu0 %v598
  %853 = vmatpush.bf16.msra.mxu0 %v596
  %854 = vmatmul.bf16.gmra.mxu0 %v166
  %v855 = vpop.f32.mrf.mxu0
  %v856 = vadd.f32 %v843, %v855
  %v857 = vpop.f32.mrf.mxu0
  %858 = vdwg.mxu0
  %859 = vmatpush.bf16.msra.mxu0 %v626
  %860 = vmatpush.bf16.msra.mxu0 %v624
  %861 = vmatpush.bf16.msra.mxu0 %v622
  %862 = vmatpush.bf16.msra.mxu0 %v620
  %863 = vmatpush.bf16.msra.mxu0 %v618
  %864 = vmatpush.bf16.msra.mxu0 %v616
  %865 = vmatpush.bf16.msra.mxu0 %v614
  %866 = vmatpush.bf16.msra.mxu0 %v612
  %867 = vmatmul.bf16.gmra.mxu0 %v167
  %v868 = vpop.f32.mrf.mxu0
  %v869 = vadd.f32 %v856, %v868
  %v870 = vpop.f32.mrf.mxu0
  %871 = vdwg.mxu0
  %872 = vmatpush.bf16.msra.mxu0 %v642
  %873 = vmatpush.bf16.msra.mxu0 %v640
  %874 = vmatpush.bf16.msra.mxu0 %v638
  %875 = vmatpush.bf16.msra.mxu0 %v636
  %876 = vmatpush.bf16.msra.mxu0 %v634
  %877 = vmatpush.bf16.msra.mxu0 %v632
  %878 = vmatpush.bf16.msra.mxu0 %v630
  %879 = vmatpush.bf16.msra.mxu0 %v628
  %880 = vmatmul.bf16.gmra.mxu0 %v168
  %v881 = vpop.f32.mrf.mxu0
  %v882 = vadd.f32 %v869, %v881
  %v883 = vpop.f32.mrf.mxu0
  %884 = vdwg.mxu0
  %885 = vmatpush.bf16.msra.mxu0 %v658
  %886 = vmatpush.bf16.msra.mxu0 %v656
  %887 = vmatpush.bf16.msra.mxu0 %v654
  %888 = vmatpush.bf16.msra.mxu0 %v652
  %889 = vmatpush.bf16.msra.mxu0 %v650
  %890 = vmatpush.bf16.msra.mxu0 %v648
  %891 = vmatpush.bf16.msra.mxu0 %v646
  %892 = vmatpush.bf16.msra.mxu0 %v644
  %893 = vmatmul.bf16.gmra.mxu0 %v169
  %v894 = vpop.f32.mrf.mxu0
  %v895 = vadd.f32 %v882, %v894
  %v896 = vpop.f32.mrf.mxu0
  %897 = vdwg.mxu0
  %898 = vmatpush.bf16.msra.mxu0 %v674
  %899 = vmatpush.bf16.msra.mxu0 %v672
  %900 = vmatpush.bf16.msra.mxu0 %v670
  %901 = vmatpush.bf16.msra.mxu0 %v668
  %902 = vmatpush.bf16.msra.mxu0 %v666
  %903 = vmatpush.bf16.msra.mxu0 %v664
  %904 = vmatpush.bf16.msra.mxu0 %v662
  %905 = vmatpush.bf16.msra.mxu0 %v660
  %906 = vmatmul.bf16.gmra.mxu0 %v170
  %v907 = vpop.f32.mrf.mxu0
  %v908 = vadd.f32 %v895, %v907
  %v909 = vpop.f32.mrf.mxu0
  %910 = vdwg.mxu0
  %911 = vmatpush.bf16.msra.mxu0 %v690
  %912 = vmatpush.bf16.msra.mxu0 %v688
  %913 = vmatpush.bf16.msra.mxu0 %v686
  %914 = vmatpush.bf16.msra.mxu0 %v684
  %915 = vmatpush.bf16.msra.mxu0 %v682
  %916 = vmatpush.bf16.msra.mxu0 %v680
  %917 = vmatpush.bf16.msra.mxu0 %v678
  %918 = vmatpush.bf16.msra.mxu0 %v676
  %919 = vmatmul.bf16.gmra.mxu0 %v171
  %v920 = vpop.f32.mrf.mxu0
  %v921 = vadd.f32 %v908, %v920
  %v922 = vpop.f32.mrf.mxu0
  %923 = vdwg.mxu0
  %924 = vmatpush.bf16.msra.mxu0 %v579
  %925 = vmatpush.bf16.msra.mxu0 %v577
  %926 = vmatpush.bf16.msra.mxu0 %v575
  %927 = vmatpush.bf16.msra.mxu0 %v573
  %928 = vmatpush.bf16.msra.mxu0 %v571
  %929 = vmatpush.bf16.msra.mxu0 %v569
  %930 = vmatpush.bf16.msra.mxu0 %v567
  %931 = vmatpush.bf16.msra.mxu0 %v565
  %932 = vmatmul.bf16.gmra.mxu0 %v164
  %v933 = vpop.f32.mrf.mxu0
  %v934 = vadd.f32 %v149, %v933
  %v935 = vpop.f32.mrf.mxu0
  %936 = vdwg.mxu0
  %937 = vmatpush.bf16.msra.mxu0 %v595
  %938 = vmatpush.bf16.msra.mxu0 %v593
  %939 = vmatpush.bf16.msra.mxu0 %v591
  %940 = vmatpush.bf16.msra.mxu0 %v589
  %941 = vmatpush.bf16.msra.mxu0 %v587
  %942 = vmatpush.bf16.msra.mxu0 %v585
  %943 = vmatpush.bf16.msra.mxu0 %v583
  %944 = vmatpush.bf16.msra.mxu0 %v581
  %945 = vmatmul.bf16.gmra.mxu0 %v165
  %v946 = vpop.f32.mrf.mxu0
  %v947 = vadd.f32 %v934, %v946
  %v948 = vpop.f32.mrf.mxu0
  %949 = vdwg.mxu0
  %950 = vmatpush.bf16.msra.mxu0 %v611
  %951 = vmatpush.bf16.msra.mxu0 %v609
  %952 = vmatpush.bf16.msra.mxu0 %v607
  %953 = vmatpush.bf16.msra.mxu0 %v605
  %954 = vmatpush.bf16.msra.mxu0 %v603
  %955 = vmatpush.bf16.msra.mxu0 %v601
  %956 = vmatpush.bf16.msra.mxu0 %v599
  %957 = vmatpush.bf16.msra.mxu0 %v597
  %958 = vmatmul.bf16.gmra.mxu0 %v166
  %v959 = vpop.f32.mrf.mxu0
  %v960 = vadd.f32 %v947, %v959
  %v961 = vpop.f32.mrf.mxu0
  %962 = vdwg.mxu0
  %963 = vmatpush.bf16.msra.mxu0 %v627
  %964 = vmatpush.bf16.msra.mxu0 %v625
  %965 = vmatpush.bf16.msra.mxu0 %v623
  %966 = vmatpush.bf16.msra.mxu0 %v621
  %967 = vmatpush.bf16.msra.mxu0 %v619
  %968 = vmatpush.bf16.msra.mxu0 %v617
  %969 = vmatpush.bf16.msra.mxu0 %v615
  %970 = vmatpush.bf16.msra.mxu0 %v613
  %971 = vmatmul.bf16.gmra.mxu0 %v167
  %v972 = vpop.f32.mrf.mxu0
  %v973 = vadd.f32 %v960, %v972
  %v974 = vpop.f32.mrf.mxu0
  %975 = vdwg.mxu0
  %976 = vmatpush.bf16.msra.mxu0 %v643
  %977 = vmatpush.bf16.msra.mxu0 %v641
  %978 = vmatpush.bf16.msra.mxu0 %v639
  %979 = vmatpush.bf16.msra.mxu0 %v637
  %980 = vmatpush.bf16.msra.mxu0 %v635
  %981 = vmatpush.bf16.msra.mxu0 %v633
  %982 = vmatpush.bf16.msra.mxu0 %v631
  %983 = vmatpush.bf16.msra.mxu0 %v629
  %984 = vmatmul.bf16.gmra.mxu0 %v168
  %v985 = vpop.f32.mrf.mxu0
  %v986 = vadd.f32 %v973, %v985
  %v987 = vpop.f32.mrf.mxu0
  %988 = vdwg.mxu0
  %989 = vmatpush.bf16.msra.mxu0 %v659
  %990 = vmatpush.bf16.msra.mxu0 %v657
  %991 = vmatpush.bf16.msra.mxu0 %v655
  %992 = vmatpush.bf16.msra.mxu0 %v653
  %993 = vmatpush.bf16.msra.mxu0 %v651
  %994 = vmatpush.bf16.msra.mxu0 %v649
  %995 = vmatpush.bf16.msra.mxu0 %v647
  %996 = vmatpush.bf16.msra.mxu0 %v645
  %997 = vmatmul.bf16.gmra.mxu0 %v169
  %v998 = vpop.f32.mrf.mxu0
  %v999 = vadd.f32 %v986, %v998
  %v1000 = vpop.f32.mrf.mxu0
  %1001 = vdwg.mxu0
  %1002 = vmatpush.bf16.msra.mxu0 %v675
  %1003 = vmatpush.bf16.msra.mxu0 %v673
  %1004 = vmatpush.bf16.msra.mxu0 %v671
  %1005 = vmatpush.bf16.msra.mxu0 %v669
  %1006 = vmatpush.bf16.msra.mxu0 %v667
  %1007 = vmatpush.bf16.msra.mxu0 %v665
  %1008 = vmatpush.bf16.msra.mxu0 %v663
  %1009 = vmatpush.bf16.msra.mxu0 %v661
  %1010 = vmatmul.bf16.gmra.mxu0 %v170
  %v1011 = vpop.f32.mrf.mxu0
  %v1012 = vadd.f32 %v999, %v1011
  %v1013 = vpop.f32.mrf.mxu0
  %1014 = vdwg.mxu0
  %1015 = vmatpush.bf16.msra.mxu0 %v691
  %1016 = vmatpush.bf16.msra.mxu0 %v689
  %1017 = vmatpush.bf16.msra.mxu0 %v687
  %1018 = vmatpush.bf16.msra.mxu0 %v685
  %1019 = vmatpush.bf16.msra.mxu0 %v683
  %1020 = vmatpush.bf16.msra.mxu0 %v681
  %1021 = vmatpush.bf16.msra.mxu0 %v679
  %1022 = vmatpush.bf16.msra.mxu0 %v677
  %1023 = vmatmul.bf16.gmra.mxu0 %v171
  %v1024 = vpop.f32.mrf.mxu0
  %v1025 = vadd.f32 %v1012, %v1024
  %v1026 = vpop.f32.mrf.mxu0
  %1027 = vdwg.mxu0
  %1028 = vst [vmem:[%s3] sm:$0xff] %v921
  %1029 = vst [vmem:[%s3 + $0x8] sm:$0xff] %v1025
  // Predicated region
  $region14: #{neural_collage_forward.2} parent=0 // pred_check
    _
  $region15: #{neural_collage_forward.2} parent=0 // pred_check_branch
    %1031 = sbr.rel (0) target = $region17
  $region16: #{neural_collage_forward.2} parent=0 // pred_region
    _
  $region17: #{neural_collage_forward.2} parent=0 // pred_fallthru
    _
  // Predicated region
  $region18: #{neural_collage_forward.2} parent=0 // pred_check
    _
  $region19: #{neural_collage_forward.2} parent=0 // pred_check_branch
    %1033 = sbr.rel (0) target = $region21
  $region20: #{neural_collage_forward.2} parent=0 // pred_region
    _
  $region21: #{neural_collage_forward.2} parent=0 // pred_fallthru
    _

// kernel: neural_collage_forward.3
$region0: #{neural_collage_forward.3}
  #allocation0 [shape = 'u32[]', space=smem, size = 0x4, offset = 0x4, fixed_abs, tag = 'smem constant byte address 0x4 - core index']
  #allocation1 [shape = 'u32[72,128]{1,0:T(1,128)}', space=vmem, size = 0x9000, scoped, tag = 'internal scratch']
  %s0 = inlined_call_operand.vmem [shape: bf16[256,256], index: 0, kind: input, shape index: {}]
  %s1 = inlined_call_operand.vmem [shape: bf16[128,256], index: 1, kind: input, shape index: {}]
  %s2 = inlined_call_operand.vmem [shape: bf16[8,256], index: 2, kind: input, shape index: {}, may-alias: {2,5}]
  %s3 = inlined_call_operand.vmem [shape: bf16[8,128], index: 3, kind: input, shape index: {}]
  %s4 = inlined_call_operand.vmem [shape: bf16[8,128], index: 4, kind: input, shape index: {}]
  %s5 = inlined_call_operand.vmem [shape: bf16[8,256], index: 5, kind: output, shape index: {}, may-alias: {2,5}]
  %s6 = sld [smem:[#allocation0]]
  $region30: #{neural_collage_forward.3} parent=0
    _
  %s8 = ssub.s32 1, %s6
  %s9 = scalar_select 0, %s8, %s6
  // Predicated region
  $region2: #{neural_collage_forward.3} parent=0 // pred_check
    _
  $region3: #{neural_collage_forward.3} parent=0 // pred_check_branch
    %11 = sbr.rel (0) target = $region5
  $region4: #{neural_collage_forward.3} parent=0 // pred_region
    _
  $region5: #{neural_collage_forward.3} parent=0 // pred_fallthru
    _
  // Predicated region
  $region6: #{neural_collage_forward.3} parent=0 // pred_check
    _
  $region7: #{neural_collage_forward.3} parent=0 // pred_check_branch
    %13 = sbr.rel (0) target = $region9
  $region8: #{neural_collage_forward.3} parent=0 // pred_region
    _
  $region9: #{neural_collage_forward.3} parent=0 // pred_fallthru
    _
  // Predicated region
  $region10: #{neural_collage_forward.3} parent=0 // pred_check
    _
  $region11: #{neural_collage_forward.3} parent=0 // pred_check_branch
    %15 = sbr.rel (0) target = $region13
  $region12: #{neural_collage_forward.3} parent=0 // pred_region
    _
  $region13: #{neural_collage_forward.3} parent=0 // pred_fallthru
    _
  // Predicated region
  $region14: #{neural_collage_forward.3} parent=0 // pred_check
    _
  $region15: #{neural_collage_forward.3} parent=0 // pred_check_branch
    %17 = sbr.rel (0) target = $region17
  $region16: #{neural_collage_forward.3} parent=0 // pred_region
    _
  $region17: #{neural_collage_forward.3} parent=0 // pred_fallthru
    _
  // Predicated region
  $region18: #{neural_collage_forward.3} parent=0 // pred_check
    _
  $region19: #{neural_collage_forward.3} parent=0 // pred_check_branch
    %19 = sbr.rel (0) target = $region21
  $region20: #{neural_collage_forward.3} parent=0 // pred_region
    _
  $region21: #{neural_collage_forward.3} parent=0 // pred_fallthru
    _
  %v20 = vld [vmem:[%s1] sm:$0xff]
  %v21 = vld [vmem:[%s1 + $0x8] sm:$0xff]
  %v22 = vld [vmem:[%s1 + $0x10] sm:$0xff]
  %v23 = vld [vmem:[%s1 + $0x18] sm:$0xff]
  %v24 = vld [vmem:[%s1 + $0x20] sm:$0xff]
  %v25 = vld [vmem:[%s1 + $0x28] sm:$0xff]
  %v26 = vld [vmem:[%s1 + $0x30] sm:$0xff]
  %v27 = vld [vmem:[%s1 + $0x38] sm:$0xff]
  %v28 = vld [vmem:[%s1 + $0x40] sm:$0xff]
  %v29 = vld [vmem:[%s1 + $0x48] sm:$0xff]
  %v30 = vld [vmem:[%s1 + $0x50] sm:$0xff]
  %v31 = vld [vmem:[%s1 + $0x58] sm:$0xff]
  %v32 = vld [vmem:[%s1 + $0x60] sm:$0xff]
  %v33 = vld [vmem:[%s1 + $0x68] sm:$0xff]
  %v34 = vld [vmem:[%s1 + $0x70] sm:$0xff]
  %v35 = vld [vmem:[%s1 + $0x78] sm:$0xff]
  %v36 = vld [vmem:[%s3] sm:$0xf]
  %v53 = vunpack.c.l.b16 %v20
  %v54 = vunpack.c.h.b16 %v20
  %v55 = vunpack.c.l.b16 %v21
  %v56 = vunpack.c.h.b16 %v21
  %v57 = vunpack.c.l.b16 %v22
  %v58 = vunpack.c.h.b16 %v22
  %v59 = vunpack.c.l.b16 %v23
  %v60 = vunpack.c.h.b16 %v23
  %v61 = vunpack.c.l.b16 %v24
  %v62 = vunpack.c.h.b16 %v24
  %v63 = vunpack.c.l.b16 %v25
  %v64 = vunpack.c.h.b16 %v25
  %v65 = vunpack.c.l.b16 %v26
  %v66 = vunpack.c.h.b16 %v26
  %v67 = vunpack.c.l.b16 %v27
  %v68 = vunpack.c.h.b16 %v27
  %v69 = vunpack.c.l.b16 %v28
  %v70 = vunpack.c.h.b16 %v28
  %v71 = vunpack.c.l.b16 %v29
  %v72 = vunpack.c.h.b16 %v29
  %v73 = vunpack.c.l.b16 %v30
  %v74 = vunpack.c.h.b16 %v30
  %v75 = vunpack.c.l.b16 %v31
  %v76 = vunpack.c.h.b16 %v31
  %v77 = vunpack.c.l.b16 %v32
  %v78 = vunpack.c.h.b16 %v32
  %v79 = vunpack.c.l.b16 %v33
  %v80 = vunpack.c.h.b16 %v33
  %v81 = vunpack.c.l.b16 %v34
  %v82 = vunpack.c.h.b16 %v34
  %v83 = vunpack.c.l.b16 %v35
  %v84 = vunpack.c.h.b16 %v35
  %v85 = vpack.c.b16 %v55, %v53
  %v86 = vpack.c.b16 %v56, %v54
  %v87 = vpack.c.b16 %v59, %v57
  %v88 = vpack.c.b16 %v60, %v58
  %v89 = vpack.c.b16 %v63, %v61
  %v90 = vpack.c.b16 %v64, %v62
  %v91 = vpack.c.b16 %v67, %v65
  %v92 = vpack.c.b16 %v68, %v66
  %v93 = vpack.c.b16 %v71, %v69
  %v94 = vpack.c.b16 %v72, %v70
  %v95 = vpack.c.b16 %v75, %v73
  %v96 = vpack.c.b16 %v76, %v74
  %v97 = vpack.c.b16 %v79, %v77
  %v98 = vpack.c.b16 %v80, %v78
  %v99 = vpack.c.b16 %v83, %v81
  %v100 = vpack.c.b16 %v84, %v82
  %117 = vmatpush.bf16.msra.mxu0 %v99
  %118 = vmatpush.bf16.msra.mxu0 %v97
  %119 = vmatpush.bf16.msra.mxu0 %v95
  %120 = vmatpush.bf16.msra.mxu0 %v93
  %121 = vmatpush.bf16.msra.mxu0 %v91
  %122 = vmatpush.bf16.msra.mxu0 %v89
  %123 = vmatpush.bf16.msra.mxu0 %v87
  %124 = vmatpush.bf16.msra.mxu0 %v85
  %125 = vmatmul.bf16.gmra.mxu0 %v36
  %v126 = vpop.f32.mrf.mxu0
  %v127 = vadd.f32 0.0, %v126
  %v128 = vpop.f32.mrf.mxu0
  %129 = vdwg.mxu0
  %130 = vmatpush.bf16.msra.mxu0 %v100
  %131 = vmatpush.bf16.msra.mxu0 %v98
  %132 = vmatpush.bf16.msra.mxu0 %v96
  %133 = vmatpush.bf16.msra.mxu0 %v94
  %134 = vmatpush.bf16.msra.mxu0 %v92
  %135 = vmatpush.bf16.msra.mxu0 %v90
  %136 = vmatpush.bf16.msra.mxu0 %v88
  %137 = vmatpush.bf16.msra.mxu0 %v86
  %138 = vmatmul.bf16.gmra.mxu0 %v36
  %v139 = vpop.f32.mrf.mxu0
  %v140 = vadd.f32 0.0, %v139
  %v141 = vpop.f32.mrf.mxu0
  %142 = vdwg.mxu0
  %v143 = vld [vmem:[%s4] sm:$0xf]
  %144 = vmatpush.bf16.msra.mxu0 %v99
  %145 = vmatpush.bf16.msra.mxu0 %v97
  %146 = vmatpush.bf16.msra.mxu0 %v95
  %147 = vmatpush.bf16.msra.mxu0 %v93
  %148 = vmatpush.bf16.msra.mxu0 %v91
  %149 = vmatpush.bf16.msra.mxu0 %v89
  %150 = vmatpush.bf16.msra.mxu0 %v87
  %151 = vmatpush.bf16.msra.mxu0 %v85
  %152 = vmatmul.bf16.gmra.mxu0 %v143
  %v153 = vpop.f32.mrf.mxu0
  %v154 = vadd.f32 0.0, %v153
  %v155 = vpop.f32.mrf.mxu0
  %156 = vdwg.mxu0
  %157 = vmatpush.bf16.msra.mxu0 %v100
  %158 = vmatpush.bf16.msra.mxu0 %v98
  %159 = vmatpush.bf16.msra.mxu0 %v96
  %160 = vmatpush.bf16.msra.mxu0 %v94
  %161 = vmatpush.bf16.msra.mxu0 %v92
  %162 = vmatpush.bf16.msra.mxu0 %v90
  %163 = vmatpush.bf16.msra.mxu0 %v88
  %164 = vmatpush.bf16.msra.mxu0 %v86
  %165 = vmatmul.bf16.gmra.mxu0 %v143
  %v166 = vpop.f32.mrf.mxu0
  %v167 = vadd.f32 0.0, %v166
  %v168 = vpop.f32.mrf.mxu0
  %169 = vdwg.mxu0
  %v170 = vld [vmem:[%s0] sm:$0xff]
  %v171 = vld [vmem:[%s0 + $0x8] sm:$0xff]
  %v172 = vld [vmem:[%s0 + $0x10] sm:$0xff]
  %v173 = vld [vmem:[%s0 + $0x18] sm:$0xff]
  %v174 = vld [vmem:[%s0 + $0x20] sm:$0xff]
  %v175 = vld [vmem:[%s0 + $0x28] sm:$0xff]
  %v176 = vld [vmem:[%s0 + $0x30] sm:$0xff]
  %v177 = vld [vmem:[%s0 + $0x38] sm:$0xff]
  %v178 = vld [vmem:[%s0 + $0x40] sm:$0xff]
  %v179 = vld [vmem:[%s0 + $0x48] sm:$0xff]
  %v180 = vld [vmem:[%s0 + $0x50] sm:$0xff]
  %v181 = vld [vmem:[%s0 + $0x58] sm:$0xff]
  %v182 = vld [vmem:[%s0 + $0x60] sm:$0xff]
  %v183 = vld [vmem:[%s0 + $0x68] sm:$0xff]
  %v184 = vld [vmem:[%s0 + $0x70] sm:$0xff]
  %v185 = vld [vmem:[%s0 + $0x78] sm:$0xff]
  %v186 = vld [vmem:[%s0 + $0x80] sm:$0xff]
  %v187 = vld [vmem:[%s0 + $0x88] sm:$0xff]
  %v188 = vld [vmem:[%s0 + $0x90] sm:$0xff]
  %v189 = vld [vmem:[%s0 + $0x98] sm:$0xff]
  %v190 = vld [vmem:[%s0 + $0xa0] sm:$0xff]
  %v191 = vld [vmem:[%s0 + $0xa8] sm:$0xff]
  %v192 = vld [vmem:[%s0 + $0xb0] sm:$0xff]
  %v193 = vld [vmem:[%s0 + $0xb8] sm:$0xff]
  %v194 = vld [vmem:[%s0 + $0xc0] sm:$0xff]
  %v195 = vld [vmem:[%s0 + $0xc8] sm:$0xff]
  %v196 = vld [vmem:[%s0 + $0xd0] sm:$0xff]
  %v197 = vld [vmem:[%s0 + $0xd8] sm:$0xff]
  %v198 = vld [vmem:[%s0 + $0xe0] sm:$0xff]
  %v199 = vld [vmem:[%s0 + $0xe8] sm:$0xff]
  %v200 = vld [vmem:[%s0 + $0xf0] sm:$0xff]
  %v201 = vld [vmem:[%s0 + $0xf8] sm:$0xff]
  %v202 = vld [vmem:[%s2] sm:$0xff]
  %v204 = vunpack.c.l.b16 %v202
  %v205 = vunpack.c.h.b16 %v202
  %v206 = vpack.c.b16 %v204, %v204
  %v207 = vpack.c.b16 %v205, %v205
  %v242 = vunpack.c.l.b16 %v170
  %v243 = vunpack.c.h.b16 %v170
  %v244 = vunpack.c.l.b16 %v171
  %v245 = vunpack.c.h.b16 %v171
  %v246 = vunpack.c.l.b16 %v172
  %v247 = vunpack.c.h.b16 %v172
  %v248 = vunpack.c.l.b16 %v173
  %v249 = vunpack.c.h.b16 %v173
  %v250 = vunpack.c.l.b16 %v174
  %v251 = vunpack.c.h.b16 %v174
  %v252 = vunpack.c.l.b16 %v175
  %v253 = vunpack.c.h.b16 %v175
  %v254 = vunpack.c.l.b16 %v176
  %v255 = vunpack.c.h.b16 %v176
  %v256 = vunpack.c.l.b16 %v177
  %v257 = vunpack.c.h.b16 %v177
  %v258 = vunpack.c.l.b16 %v178
  %v259 = vunpack.c.h.b16 %v178
  %v260 = vunpack.c.l.b16 %v179
  %v261 = vunpack.c.h.b16 %v179
  %v262 = vunpack.c.l.b16 %v180
  %v263 = vunpack.c.h.b16 %v180
  %v264 = vunpack.c.l.b16 %v181
  %v265 = vunpack.c.h.b16 %v181
  %v266 = vunpack.c.l.b16 %v182
  %v267 = vunpack.c.h.b16 %v182
  %v268 = vunpack.c.l.b16 %v183
  %v269 = vunpack.c.h.b16 %v183
  %v270 = vunpack.c.l.b16 %v184
  %v271 = vunpack.c.h.b16 %v184
  %v272 = vunpack.c.l.b16 %v185
  %v273 = vunpack.c.h.b16 %v185
  %v274 = vunpack.c.l.b16 %v186
  %v275 = vunpack.c.h.b16 %v186
  %v276 = vunpack.c.l.b16 %v187
  %v277 = vunpack.c.h.b16 %v187
  %v278 = vunpack.c.l.b16 %v188
  %v279 = vunpack.c.h.b16 %v188
  %v280 = vunpack.c.l.b16 %v189
  %v281 = vunpack.c.h.b16 %v189
  %v282 = vunpack.c.l.b16 %v190
  %v283 = vunpack.c.h.b16 %v190
  %v284 = vunpack.c.l.b16 %v191
  %v285 = vunpack.c.h.b16 %v191
  %v286 = vunpack.c.l.b16 %v192
  %v287 = vunpack.c.h.b16 %v192
  %v288 = vunpack.c.l.b16 %v193
  %v289 = vunpack.c.h.b16 %v193
  %v290 = vunpack.c.l.b16 %v194
  %v291 = vunpack.c.h.b16 %v194
  %v292 = vunpack.c.l.b16 %v195
  %v293 = vunpack.c.h.b16 %v195
  %v294 = vunpack.c.l.b16 %v196
  %v295 = vunpack.c.h.b16 %v196
  %v296 = vunpack.c.l.b16 %v197
  %v297 = vunpack.c.h.b16 %v197
  %v298 = vunpack.c.l.b16 %v198
  %v299 = vunpack.c.h.b16 %v198
  %v300 = vunpack.c.l.b16 %v199
  %v301 = vunpack.c.h.b16 %v199
  %v302 = vunpack.c.l.b16 %v200
  %v303 = vunpack.c.h.b16 %v200
  %v304 = vunpack.c.l.b16 %v201
  %v305 = vunpack.c.h.b16 %v201
  %v306 = vpack.c.b16 %v244, %v242
  %v307 = vpack.c.b16 %v245, %v243
  %v308 = vpack.c.b16 %v248, %v246
  %v309 = vpack.c.b16 %v249, %v247
  %v310 = vpack.c.b16 %v252, %v250
  %v311 = vpack.c.b16 %v253, %v251
  %v312 = vpack.c.b16 %v256, %v254
  %v313 = vpack.c.b16 %v257, %v255
  %v314 = vpack.c.b16 %v260, %v258
  %v315 = vpack.c.b16 %v261, %v259
  %v316 = vpack.c.b16 %v264, %v262
  %v317 = vpack.c.b16 %v265, %v263
  %v318 = vpack.c.b16 %v268, %v266
  %v319 = vpack.c.b16 %v269, %v267
  %v320 = vpack.c.b16 %v272, %v270
  %v321 = vpack.c.b16 %v273, %v271
  %v322 = vpack.c.b16 %v276, %v274
  %v323 = vpack.c.b16 %v277, %v275
  %v324 = vpack.c.b16 %v280, %v278
  %v325 = vpack.c.b16 %v281, %v279
  %v326 = vpack.c.b16 %v284, %v282
  %v327 = vpack.c.b16 %v285, %v283
  %v328 = vpack.c.b16 %v288, %v286
  %v329 = vpack.c.b16 %v289, %v287
  %v330 = vpack.c.b16 %v292, %v290
  %v331 = vpack.c.b16 %v293, %v291
  %v332 = vpack.c.b16 %v296, %v294
  %v333 = vpack.c.b16 %v297, %v295
  %v334 = vpack.c.b16 %v300, %v298
  %v335 = vpack.c.b16 %v301, %v299
  %v336 = vpack.c.b16 %v304, %v302
  %v337 = vpack.c.b16 %v305, %v303
  %370 = vmatpush.bf16.msra.mxu0 %v320
  %371 = vmatpush.bf16.msra.mxu0 %v318
  %372 = vmatpush.bf16.msra.mxu0 %v316
  %373 = vmatpush.bf16.msra.mxu0 %v314
  %374 = vmatpush.bf16.msra.mxu0 %v312
  %375 = vmatpush.bf16.msra.mxu0 %v310
  %376 = vmatpush.bf16.msra.mxu0 %v308
  %377 = vmatpush.bf16.msra.mxu0 %v306
  %378 = vmatmul.bf16.gmra.mxu0 %v206
  %v379 = vpop.f32.mrf.mxu0
  %v380 = vadd.f32 0.0, %v379
  %v381 = vpop.f32.mrf.mxu0
  %382 = vdwg.mxu0
  %383 = vmatpush.bf16.msra.mxu0 %v336
  %384 = vmatpush.bf16.msra.mxu0 %v334
  %385 = vmatpush.bf16.msra.mxu0 %v332
  %386 = vmatpush.bf16.msra.mxu0 %v330
  %387 = vmatpush.bf16.msra.mxu0 %v328
  %388 = vmatpush.bf16.msra.mxu0 %v326
  %389 = vmatpush.bf16.msra.mxu0 %v324
  %390 = vmatpush.bf16.msra.mxu0 %v322
  %391 = vmatmul.bf16.gmra.mxu0 %v207
  %v392 = vpop.f32.mrf.mxu0
  %v393 = vadd.f32 %v380, %v392
  %v394 = vpop.f32.mrf.mxu0
  %395 = vdwg.mxu0
  %396 = vmatpush.bf16.msra.mxu0 %v321
  %397 = vmatpush.bf16.msra.mxu0 %v319
  %398 = vmatpush.bf16.msra.mxu0 %v317
  %399 = vmatpush.bf16.msra.mxu0 %v315
  %400 = vmatpush.bf16.msra.mxu0 %v313
  %401 = vmatpush.bf16.msra.mxu0 %v311
  %402 = vmatpush.bf16.msra.mxu0 %v309
  %403 = vmatpush.bf16.msra.mxu0 %v307
  %404 = vmatmul.bf16.gmra.mxu0 %v206
  %v405 = vpop.f32.mrf.mxu0
  %v406 = vadd.f32 0.0, %v405
  %v407 = vpop.f32.mrf.mxu0
  %408 = vdwg.mxu0
  %409 = vmatpush.bf16.msra.mxu0 %v337
  %410 = vmatpush.bf16.msra.mxu0 %v335
  %411 = vmatpush.bf16.msra.mxu0 %v333
  %412 = vmatpush.bf16.msra.mxu0 %v331
  %413 = vmatpush.bf16.msra.mxu0 %v329
  %414 = vmatpush.bf16.msra.mxu0 %v327
  %415 = vmatpush.bf16.msra.mxu0 %v325
  %416 = vmatpush.bf16.msra.mxu0 %v323
  %417 = vmatmul.bf16.gmra.mxu0 %v207
  %v418 = vpop.f32.mrf.mxu0
  %v419 = vadd.f32 %v406, %v418
  %v420 = vpop.f32.mrf.mxu0
  %421 = vdwg.mxu0
  %v422 = vmul.f32 %v393, %v127
  %v423 = vmul.f32 %v419, %v140
  %v424 = vadd.f32 %v422, %v154
  %v425 = vadd.f32 %v423, %v167
  %v426 = vpack.c.bf16 %v424, %v424
  %v427 = vpack.c.bf16 %v425, %v425
  %428 = vmatpush.bf16.msra.mxu0 %v320
  %429 = vmatpush.bf16.msra.mxu0 %v318
  %430 = vmatpush.bf16.msra.mxu0 %v316
  %431 = vmatpush.bf16.msra.mxu0 %v314
  %432 = vmatpush.bf16.msra.mxu0 %v312
  %433 = vmatpush.bf16.msra.mxu0 %v310
  %434 = vmatpush.bf16.msra.mxu0 %v308
  %435 = vmatpush.bf16.msra.mxu0 %v306
  %436 = vmatmul.bf16.gmra.mxu0 %v426
  %v437 = vpop.f32.mrf.mxu0
  %v438 = vadd.f32 0.0, %v437
  %v439 = vpop.f32.mrf.mxu0
  %440 = vdwg.mxu0
  %441 = vmatpush.bf16.msra.mxu0 %v336
  %442 = vmatpush.bf16.msra.mxu0 %v334
  %443 = vmatpush.bf16.msra.mxu0 %v332
  %444 = vmatpush.bf16.msra.mxu0 %v330
  %445 = vmatpush.bf16.msra.mxu0 %v328
  %446 = vmatpush.bf16.msra.mxu0 %v326
  %447 = vmatpush.bf16.msra.mxu0 %v324
  %448 = vmatpush.bf16.msra.mxu0 %v322
  %449 = vmatmul.bf16.gmra.mxu0 %v427
  %v450 = vpop.f32.mrf.mxu0
  %v451 = vadd.f32 %v438, %v450
  %v452 = vpop.f32.mrf.mxu0
  %453 = vdwg.mxu0
  %454 = vmatpush.bf16.msra.mxu0 %v321
  %455 = vmatpush.bf16.msra.mxu0 %v319
  %456 = vmatpush.bf16.msra.mxu0 %v317
  %457 = vmatpush.bf16.msra.mxu0 %v315
  %458 = vmatpush.bf16.msra.mxu0 %v313
  %459 = vmatpush.bf16.msra.mxu0 %v311
  %460 = vmatpush.bf16.msra.mxu0 %v309
  %461 = vmatpush.bf16.msra.mxu0 %v307
  %462 = vmatmul.bf16.gmra.mxu0 %v426
  %v463 = vpop.f32.mrf.mxu0
  %v464 = vadd.f32 0.0, %v463
  %v465 = vpop.f32.mrf.mxu0
  %466 = vdwg.mxu0
  %467 = vmatpush.bf16.msra.mxu0 %v337
  %468 = vmatpush.bf16.msra.mxu0 %v335
  %469 = vmatpush.bf16.msra.mxu0 %v333
  %470 = vmatpush.bf16.msra.mxu0 %v331
  %471 = vmatpush.bf16.msra.mxu0 %v329
  %472 = vmatpush.bf16.msra.mxu0 %v327
  %473 = vmatpush.bf16.msra.mxu0 %v325
  %474 = vmatpush.bf16.msra.mxu0 %v323
  %475 = vmatmul.bf16.gmra.mxu0 %v427
  %v476 = vpop.f32.mrf.mxu0
  %v477 = vadd.f32 %v464, %v476
  %v478 = vpop.f32.mrf.mxu0
  %479 = vdwg.mxu0
  %v480 = vmul.f32 %v451, %v127
  %v481 = vmul.f32 %v477, %v140
  %v482 = vadd.f32 %v480, %v154
  %v483 = vadd.f32 %v481, %v167
  %v484 = vpack.c.bf16 %v482, %v482
  %v485 = vpack.c.bf16 %v483, %v483
  %486 = vmatpush.bf16.msra.mxu0 %v320
  %487 = vmatpush.bf16.msra.mxu0 %v318
  %488 = vmatpush.bf16.msra.mxu0 %v316
  %489 = vmatpush.bf16.msra.mxu0 %v314
  %490 = vmatpush.bf16.msra.mxu0 %v312
  %491 = vmatpush.bf16.msra.mxu0 %v310
  %492 = vmatpush.bf16.msra.mxu0 %v308
  %493 = vmatpush.bf16.msra.mxu0 %v306
  %494 = vmatmul.bf16.gmra.mxu0 %v484
  %v495 = vpop.f32.mrf.mxu0
  %v496 = vadd.f32 0.0, %v495
  %v497 = vpop.f32.mrf.mxu0
  %498 = vdwg.mxu0
  %499 = vmatpush.bf16.msra.mxu0 %v336
  %500 = vmatpush.bf16.msra.mxu0 %v334
  %501 = vmatpush.bf16.msra.mxu0 %v332
  %502 = vmatpush.bf16.msra.mxu0 %v330
  %503 = vmatpush.bf16.msra.mxu0 %v328
  %504 = vmatpush.bf16.msra.mxu0 %v326
  %505 = vmatpush.bf16.msra.mxu0 %v324
  %506 = vmatpush.bf16.msra.mxu0 %v322
  %507 = vmatmul.bf16.gmra.mxu0 %v485
  %v508 = vpop.f32.mrf.mxu0
  %v509 = vadd.f32 %v496, %v508
  %v510 = vpop.f32.mrf.mxu0
  %511 = vdwg.mxu0
  %512 = vmatpush.bf16.msra.mxu0 %v321
  %513 = vmatpush.bf16.msra.mxu0 %v319
  %514 = vmatpush.bf16.msra.mxu0 %v317
  %515 = vmatpush.bf16.msra.mxu0 %v315
  %516 = vmatpush.bf16.msra.mxu0 %v313
  %517 = vmatpush.bf16.msra.mxu0 %v311
  %518 = vmatpush.bf16.msra.mxu0 %v309
  %519 = vmatpush.bf16.msra.mxu0 %v307
  %520 = vmatmul.bf16.gmra.mxu0 %v484
  %v521 = vpop.f32.mrf.mxu0
  %v522 = vadd.f32 0.0, %v521
  %v523 = vpop.f32.mrf.mxu0
  %524 = vdwg.mxu0
  %525 = vmatpush.bf16.msra.mxu0 %v337
  %526 = vmatpush.bf16.msra.mxu0 %v335
  %527 = vmatpush.bf16.msra.mxu0 %v333
  %528 = vmatpush.bf16.msra.mxu0 %v331
  %529 = vmatpush.bf16.msra.mxu0 %v329
  %530 = vmatpush.bf16.msra.mxu0 %v327
  %531 = vmatpush.bf16.msra.mxu0 %v325
  %532 = vmatpush.bf16.msra.mxu0 %v323
  %533 = vmatmul.bf16.gmra.mxu0 %v485
  %v534 = vpop.f32.mrf.mxu0
  %v535 = vadd.f32 %v522, %v534
  %v536 = vpop.f32.mrf.mxu0
  %537 = vdwg.mxu0
  %v538 = vmul.f32 %v509, %v127
  %v539 = vmul.f32 %v535, %v140
  %v540 = vadd.f32 %v538, %v154
  %v541 = vadd.f32 %v539, %v167
  %v542 = vpack.c.bf16 %v540, %v540
  %v543 = vpack.c.bf16 %v541, %v541
  %544 = vmatpush.bf16.msra.mxu0 %v320
  %545 = vmatpush.bf16.msra.mxu0 %v318
  %546 = vmatpush.bf16.msra.mxu0 %v316
  %547 = vmatpush.bf16.msra.mxu0 %v314
  %548 = vmatpush.bf16.msra.mxu0 %v312
  %549 = vmatpush.bf16.msra.mxu0 %v310
  %550 = vmatpush.bf16.msra.mxu0 %v308
  %551 = vmatpush.bf16.msra.mxu0 %v306
  %552 = vmatmul.bf16.gmra.mxu0 %v542
  %v553 = vpop.f32.mrf.mxu0
  %v554 = vadd.f32 0.0, %v553
  %v555 = vpop.f32.mrf.mxu0
  %556 = vdwg.mxu0
  %557 = vmatpush.bf16.msra.mxu0 %v336
  %558 = vmatpush.bf16.msra.mxu0 %v334
  %559 = vmatpush.bf16.msra.mxu0 %v332
  %560 = vmatpush.bf16.msra.mxu0 %v330
  %561 = vmatpush.bf16.msra.mxu0 %v328
  %562 = vmatpush.bf16.msra.mxu0 %v326
  %563 = vmatpush.bf16.msra.mxu0 %v324
  %564 = vmatpush.bf16.msra.mxu0 %v322
  %565 = vmatmul.bf16.gmra.mxu0 %v543
  %v566 = vpop.f32.mrf.mxu0
  %v567 = vadd.f32 %v554, %v566
  %v568 = vpop.f32.mrf.mxu0
  %569 = vdwg.mxu0
  %570 = vmatpush.bf16.msra.mxu0 %v321
  %571 = vmatpush.bf16.msra.mxu0 %v319
  %572 = vmatpush.bf16.msra.mxu0 %v317
  %573 = vmatpush.bf16.msra.mxu0 %v315
  %574 = vmatpush.bf16.msra.mxu0 %v313
  %575 = vmatpush.bf16.msra.mxu0 %v311
  %576 = vmatpush.bf16.msra.mxu0 %v309
  %577 = vmatpush.bf16.msra.mxu0 %v307
  %578 = vmatmul.bf16.gmra.mxu0 %v542
  %v579 = vpop.f32.mrf.mxu0
  %v580 = vadd.f32 0.0, %v579
  %v581 = vpop.f32.mrf.mxu0
  %582 = vdwg.mxu0
  %583 = vmatpush.bf16.msra.mxu0 %v337
  %584 = vmatpush.bf16.msra.mxu0 %v335
  %585 = vmatpush.bf16.msra.mxu0 %v333
  %586 = vmatpush.bf16.msra.mxu0 %v331
  %587 = vmatpush.bf16.msra.mxu0 %v329
  %588 = vmatpush.bf16.msra.mxu0 %v327
  %589 = vmatpush.bf16.msra.mxu0 %v325
  %590 = vmatpush.bf16.msra.mxu0 %v323
  %591 = vmatmul.bf16.gmra.mxu0 %v543
  %v592 = vpop.f32.mrf.mxu0
  %v593 = vadd.f32 %v580, %v592
  %v594 = vpop.f32.mrf.mxu0
  %595 = vdwg.mxu0
  %v596 = vmul.f32 %v567, %v127
  %v597 = vmul.f32 %v593, %v140
  %v598 = vadd.f32 %v596, %v154
  %v599 = vadd.f32 %v597, %v167
  %v600 = vpack.c.bf16 %v598, %v598
  %v601 = vpack.c.bf16 %v599, %v599
  %602 = vmatpush.bf16.msra.mxu0 %v320
  %603 = vmatpush.bf16.msra.mxu0 %v318
  %604 = vmatpush.bf16.msra.mxu0 %v316
  %605 = vmatpush.bf16.msra.mxu0 %v314
  %606 = vmatpush.bf16.msra.mxu0 %v312
  %607 = vmatpush.bf16.msra.mxu0 %v310
  %608 = vmatpush.bf16.msra.mxu0 %v308
  %609 = vmatpush.bf16.msra.mxu0 %v306
  %610 = vmatmul.bf16.gmra.mxu0 %v600
  %v611 = vpop.f32.mrf.mxu0
  %v612 = vadd.f32 0.0, %v611
  %v613 = vpop.f32.mrf.mxu0
  %614 = vdwg.mxu0
  %615 = vmatpush.bf16.msra.mxu0 %v336
  %616 = vmatpush.bf16.msra.mxu0 %v334
  %617 = vmatpush.bf16.msra.mxu0 %v332
  %618 = vmatpush.bf16.msra.mxu0 %v330
  %619 = vmatpush.bf16.msra.mxu0 %v328
  %620 = vmatpush.bf16.msra.mxu0 %v326
  %621 = vmatpush.bf16.msra.mxu0 %v324
  %622 = vmatpush.bf16.msra.mxu0 %v322
  %623 = vmatmul.bf16.gmra.mxu0 %v601
  %v624 = vpop.f32.mrf.mxu0
  %v625 = vadd.f32 %v612, %v624
  %v626 = vpop.f32.mrf.mxu0
  %627 = vdwg.mxu0
  %628 = vmatpush.bf16.msra.mxu0 %v321
  %629 = vmatpush.bf16.msra.mxu0 %v319
  %630 = vmatpush.bf16.msra.mxu0 %v317
  %631 = vmatpush.bf16.msra.mxu0 %v315
  %632 = vmatpush.bf16.msra.mxu0 %v313
  %633 = vmatpush.bf16.msra.mxu0 %v311
  %634 = vmatpush.bf16.msra.mxu0 %v309
  %635 = vmatpush.bf16.msra.mxu0 %v307
  %636 = vmatmul.bf16.gmra.mxu0 %v600
  %v637 = vpop.f32.mrf.mxu0
  %v638 = vadd.f32 0.0, %v637
  %v639 = vpop.f32.mrf.mxu0
  %640 = vdwg.mxu0
  %641 = vmatpush.bf16.msra.mxu0 %v337
  %642 = vmatpush.bf16.msra.mxu0 %v335
  %643 = vmatpush.bf16.msra.mxu0 %v333
  %644 = vmatpush.bf16.msra.mxu0 %v331
  %645 = vmatpush.bf16.msra.mxu0 %v329
  %646 = vmatpush.bf16.msra.mxu0 %v327
  %647 = vmatpush.bf16.msra.mxu0 %v325
  %648 = vmatpush.bf16.msra.mxu0 %v323
  %649 = vmatmul.bf16.gmra.mxu0 %v601
  %v650 = vpop.f32.mrf.mxu0
  %v651 = vadd.f32 %v638, %v650
  %v652 = vpop.f32.mrf.mxu0
  %653 = vdwg.mxu0
  %v654 = vmul.f32 %v625, %v127
  %v655 = vmul.f32 %v651, %v140
  %v656 = vadd.f32 %v654, %v154
  %v657 = vadd.f32 %v655, %v167
  %v658 = vpack.c.bf16 %v656, %v656
  %v659 = vpack.c.bf16 %v657, %v657
  %660 = vmatpush.bf16.msra.mxu0 %v320
  %661 = vmatpush.bf16.msra.mxu0 %v318
  %662 = vmatpush.bf16.msra.mxu0 %v316
  %663 = vmatpush.bf16.msra.mxu0 %v314
  %664 = vmatpush.bf16.msra.mxu0 %v312
  %665 = vmatpush.bf16.msra.mxu0 %v310
  %666 = vmatpush.bf16.msra.mxu0 %v308
  %667 = vmatpush.bf16.msra.mxu0 %v306
  %668 = vmatmul.bf16.gmra.mxu0 %v658
  %v669 = vpop.f32.mrf.mxu0
  %v670 = vadd.f32 0.0, %v669
  %v671 = vpop.f32.mrf.mxu0
  %672 = vdwg.mxu0
  %673 = vmatpush.bf16.msra.mxu0 %v336
  %674 = vmatpush.bf16.msra.mxu0 %v334
  %675 = vmatpush.bf16.msra.mxu0 %v332
  %676 = vmatpush.bf16.msra.mxu0 %v330
  %677 = vmatpush.bf16.msra.mxu0 %v328
  %678 = vmatpush.bf16.msra.mxu0 %v326
  %679 = vmatpush.bf16.msra.mxu0 %v324
  %680 = vmatpush.bf16.msra.mxu0 %v322
  %681 = vmatmul.bf16.gmra.mxu0 %v659
  %v682 = vpop.f32.mrf.mxu0
  %v683 = vadd.f32 %v670, %v682
  %v684 = vpop.f32.mrf.mxu0
  %685 = vdwg.mxu0
  %686 = vmatpush.bf16.msra.mxu0 %v321
  %687 = vmatpush.bf16.msra.mxu0 %v319
  %688 = vmatpush.bf16.msra.mxu0 %v317
  %689 = vmatpush.bf16.msra.mxu0 %v315
  %690 = vmatpush.bf16.msra.mxu0 %v313
  %691 = vmatpush.bf16.msra.mxu0 %v311
  %692 = vmatpush.bf16.msra.mxu0 %v309
  %693 = vmatpush.bf16.msra.mxu0 %v307
  %694 = vmatmul.bf16.gmra.mxu0 %v658
  %v695 = vpop.f32.mrf.mxu0
  %v696 = vadd.f32 0.0, %v695
  %v697 = vpop.f32.mrf.mxu0
  %698 = vdwg.mxu0
  %699 = vmatpush.bf16.msra.mxu0 %v337
  %700 = vmatpush.bf16.msra.mxu0 %v335
  %701 = vmatpush.bf16.msra.mxu0 %v333
  %702 = vmatpush.bf16.msra.mxu0 %v331
  %703 = vmatpush.bf16.msra.mxu0 %v329
  %704 = vmatpush.bf16.msra.mxu0 %v327
  %705 = vmatpush.bf16.msra.mxu0 %v325
  %706 = vmatpush.bf16.msra.mxu0 %v323
  %707 = vmatmul.bf16.gmra.mxu0 %v659
  %v708 = vpop.f32.mrf.mxu0
  %v709 = vadd.f32 %v696, %v708
  %v710 = vpop.f32.mrf.mxu0
  %711 = vdwg.mxu0
  %v712 = vmul.f32 %v683, %v127
  %v713 = vmul.f32 %v709, %v140
  %v714 = vadd.f32 %v712, %v154
  %v715 = vadd.f32 %v713, %v167
  %v716 = vpack.c.bf16 %v714, %v714
  %v717 = vpack.c.bf16 %v715, %v715
  %718 = vmatpush.bf16.msra.mxu0 %v320
  %719 = vmatpush.bf16.msra.mxu0 %v318
  %720 = vmatpush.bf16.msra.mxu0 %v316
  %721 = vmatpush.bf16.msra.mxu0 %v314
  %722 = vmatpush.bf16.msra.mxu0 %v312
  %723 = vmatpush.bf16.msra.mxu0 %v310
  %724 = vmatpush.bf16.msra.mxu0 %v308
  %725 = vmatpush.bf16.msra.mxu0 %v306
  %726 = vmatmul.bf16.gmra.mxu0 %v716
  %v727 = vpop.f32.mrf.mxu0
  %v728 = vadd.f32 0.0, %v727
  %v729 = vpop.f32.mrf.mxu0
  %730 = vdwg.mxu0
  %731 = vmatpush.bf16.msra.mxu0 %v336
  %732 = vmatpush.bf16.msra.mxu0 %v334
  %733 = vmatpush.bf16.msra.mxu0 %v332
  %734 = vmatpush.bf16.msra.mxu0 %v330
  %735 = vmatpush.bf16.msra.mxu0 %v328
  %736 = vmatpush.bf16.msra.mxu0 %v326
  %737 = vmatpush.bf16.msra.mxu0 %v324
  %738 = vmatpush.bf16.msra.mxu0 %v322
  %739 = vmatmul.bf16.gmra.mxu0 %v717
  %v740 = vpop.f32.mrf.mxu0
  %v741 = vadd.f32 %v728, %v740
  %v742 = vpop.f32.mrf.mxu0
  %743 = vdwg.mxu0
  %744 = vmatpush.bf16.msra.mxu0 %v321
  %745 = vmatpush.bf16.msra.mxu0 %v319
  %746 = vmatpush.bf16.msra.mxu0 %v317
  %747 = vmatpush.bf16.msra.mxu0 %v315
  %748 = vmatpush.bf16.msra.mxu0 %v313
  %749 = vmatpush.bf16.msra.mxu0 %v311
  %750 = vmatpush.bf16.msra.mxu0 %v309
  %751 = vmatpush.bf16.msra.mxu0 %v307
  %752 = vmatmul.bf16.gmra.mxu0 %v716
  %v753 = vpop.f32.mrf.mxu0
  %v754 = vadd.f32 0.0, %v753
  %v755 = vpop.f32.mrf.mxu0
  %756 = vdwg.mxu0
  %757 = vmatpush.bf16.msra.mxu0 %v337
  %758 = vmatpush.bf16.msra.mxu0 %v335
  %759 = vmatpush.bf16.msra.mxu0 %v333
  %760 = vmatpush.bf16.msra.mxu0 %v331
  %761 = vmatpush.bf16.msra.mxu0 %v329
  %762 = vmatpush.bf16.msra.mxu0 %v327
  %763 = vmatpush.bf16.msra.mxu0 %v325
  %764 = vmatpush.bf16.msra.mxu0 %v323
  %765 = vmatmul.bf16.gmra.mxu0 %v717
  %v766 = vpop.f32.mrf.mxu0
  %v767 = vadd.f32 %v754, %v766
  %v768 = vpop.f32.mrf.mxu0
  %769 = vdwg.mxu0
  %v770 = vmul.f32 %v741, %v127
  %v771 = vmul.f32 %v767, %v140
  %v772 = vadd.f32 %v770, %v154
  %v773 = vadd.f32 %v771, %v167
  %v774 = vpack.c.bf16 %v772, %v772
  %v775 = vpack.c.bf16 %v773, %v773
  %776 = vmatpush.bf16.msra.mxu0 %v320
  %777 = vmatpush.bf16.msra.mxu0 %v318
  %778 = vmatpush.bf16.msra.mxu0 %v316
  %779 = vmatpush.bf16.msra.mxu0 %v314
  %780 = vmatpush.bf16.msra.mxu0 %v312
  %781 = vmatpush.bf16.msra.mxu0 %v310
  %782 = vmatpush.bf16.msra.mxu0 %v308
  %783 = vmatpush.bf16.msra.mxu0 %v306
  %784 = vmatmul.bf16.gmra.mxu0 %v774
  %v785 = vpop.f32.mrf.mxu0
  %v786 = vadd.f32 0.0, %v785
  %v787 = vpop.f32.mrf.mxu0
  %788 = vdwg.mxu0
  %789 = vmatpush.bf16.msra.mxu0 %v336
  %790 = vmatpush.bf16.msra.mxu0 %v334
  %791 = vmatpush.bf16.msra.mxu0 %v332
  %792 = vmatpush.bf16.msra.mxu0 %v330
  %793 = vmatpush.bf16.msra.mxu0 %v328
  %794 = vmatpush.bf16.msra.mxu0 %v326
  %795 = vmatpush.bf16.msra.mxu0 %v324
  %796 = vmatpush.bf16.msra.mxu0 %v322
  %797 = vmatmul.bf16.gmra.mxu0 %v775
  %v798 = vpop.f32.mrf.mxu0
  %v799 = vadd.f32 %v786, %v798
  %v800 = vpop.f32.mrf.mxu0
  %801 = vdwg.mxu0
  %802 = vmatpush.bf16.msra.mxu0 %v321
  %803 = vmatpush.bf16.msra.mxu0 %v319
  %804 = vmatpush.bf16.msra.mxu0 %v317
  %805 = vmatpush.bf16.msra.mxu0 %v315
  %806 = vmatpush.bf16.msra.mxu0 %v313
  %807 = vmatpush.bf16.msra.mxu0 %v311
  %808 = vmatpush.bf16.msra.mxu0 %v309
  %809 = vmatpush.bf16.msra.mxu0 %v307
  %810 = vmatmul.bf16.gmra.mxu0 %v774
  %v811 = vpop.f32.mrf.mxu0
  %v812 = vadd.f32 0.0, %v811
  %v813 = vpop.f32.mrf.mxu0
  %814 = vdwg.mxu0
  %815 = vmatpush.bf16.msra.mxu0 %v337
  %816 = vmatpush.bf16.msra.mxu0 %v335
  %817 = vmatpush.bf16.msra.mxu0 %v333
  %818 = vmatpush.bf16.msra.mxu0 %v331
  %819 = vmatpush.bf16.msra.mxu0 %v329
  %820 = vmatpush.bf16.msra.mxu0 %v327
  %821 = vmatpush.bf16.msra.mxu0 %v325
  %822 = vmatpush.bf16.msra.mxu0 %v323
  %823 = vmatmul.bf16.gmra.mxu0 %v775
  %v824 = vpop.f32.mrf.mxu0
  %v825 = vadd.f32 %v812, %v824
  %v826 = vpop.f32.mrf.mxu0
  %827 = vdwg.mxu0
  %v828 = vmul.f32 %v799, %v127
  %v829 = vmul.f32 %v825, %v140
  %v830 = vadd.f32 %v828, %v154
  %v831 = vadd.f32 %v829, %v167
  %v832 = vpack.c.bf16 %v830, %v830
  %v833 = vpack.c.bf16 %v831, %v831
  %834 = vmatpush.bf16.msra.mxu0 %v320
  %835 = vmatpush.bf16.msra.mxu0 %v318
  %836 = vmatpush.bf16.msra.mxu0 %v316
  %837 = vmatpush.bf16.msra.mxu0 %v314
  %838 = vmatpush.bf16.msra.mxu0 %v312
  %839 = vmatpush.bf16.msra.mxu0 %v310
  %840 = vmatpush.bf16.msra.mxu0 %v308
  %841 = vmatpush.bf16.msra.mxu0 %v306
  %842 = vmatmul.bf16.gmra.mxu0 %v832
  %v843 = vpop.f32.mrf.mxu0
  %v844 = vadd.f32 0.0, %v843
  %v845 = vpop.f32.mrf.mxu0
  %846 = vdwg.mxu0
  %847 = vmatpush.bf16.msra.mxu0 %v336
  %848 = vmatpush.bf16.msra.mxu0 %v334
  %849 = vmatpush.bf16.msra.mxu0 %v332
  %850 = vmatpush.bf16.msra.mxu0 %v330
  %851 = vmatpush.bf16.msra.mxu0 %v328
  %852 = vmatpush.bf16.msra.mxu0 %v326
  %853 = vmatpush.bf16.msra.mxu0 %v324
  %854 = vmatpush.bf16.msra.mxu0 %v322
  %855 = vmatmul.bf16.gmra.mxu0 %v833
  %v856 = vpop.f32.mrf.mxu0
  %v857 = vadd.f32 %v844, %v856
  %v858 = vpop.f32.mrf.mxu0
  %859 = vdwg.mxu0
  %860 = vmatpush.bf16.msra.mxu0 %v321
  %861 = vmatpush.bf16.msra.mxu0 %v319
  %862 = vmatpush.bf16.msra.mxu0 %v317
  %863 = vmatpush.bf16.msra.mxu0 %v315
  %864 = vmatpush.bf16.msra.mxu0 %v313
  %865 = vmatpush.bf16.msra.mxu0 %v311
  %866 = vmatpush.bf16.msra.mxu0 %v309
  %867 = vmatpush.bf16.msra.mxu0 %v307
  %868 = vmatmul.bf16.gmra.mxu0 %v832
  %v869 = vpop.f32.mrf.mxu0
  %v870 = vadd.f32 0.0, %v869
  %v871 = vpop.f32.mrf.mxu0
  %872 = vdwg.mxu0
  %873 = vmatpush.bf16.msra.mxu0 %v337
  %874 = vmatpush.bf16.msra.mxu0 %v335
  %875 = vmatpush.bf16.msra.mxu0 %v333
  %876 = vmatpush.bf16.msra.mxu0 %v331
  %877 = vmatpush.bf16.msra.mxu0 %v329
  %878 = vmatpush.bf16.msra.mxu0 %v327
  %879 = vmatpush.bf16.msra.mxu0 %v325
  %880 = vmatpush.bf16.msra.mxu0 %v323
  %881 = vmatmul.bf16.gmra.mxu0 %v833
  %v882 = vpop.f32.mrf.mxu0
  %v883 = vadd.f32 %v870, %v882
  %v884 = vpop.f32.mrf.mxu0
  %885 = vdwg.mxu0
  %v886 = vmul.f32 %v857, %v127
  %v887 = vmul.f32 %v883, %v140
  %v888 = vadd.f32 %v886, %v154
  %v889 = vadd.f32 %v887, %v167
  %v890 = vpack.c.bf16 %v888, %v888
  %v891 = vpack.c.bf16 %v889, %v889
  %892 = vmatpush.bf16.msra.mxu0 %v320
  %893 = vmatpush.bf16.msra.mxu0 %v318
  %894 = vmatpush.bf16.msra.mxu0 %v316
  %895 = vmatpush.bf16.msra.mxu0 %v314
  %896 = vmatpush.bf16.msra.mxu0 %v312
  %897 = vmatpush.bf16.msra.mxu0 %v310
  %898 = vmatpush.bf16.msra.mxu0 %v308
  %899 = vmatpush.bf16.msra.mxu0 %v306
  %900 = vmatmul.bf16.gmra.mxu0 %v890
  %v901 = vpop.f32.mrf.mxu0
  %v902 = vadd.f32 0.0, %v901
  %v903 = vpop.f32.mrf.mxu0
  %904 = vdwg.mxu0
  %905 = vmatpush.bf16.msra.mxu0 %v336
  %906 = vmatpush.bf16.msra.mxu0 %v334
  %907 = vmatpush.bf16.msra.mxu0 %v332
  %908 = vmatpush.bf16.msra.mxu0 %v330
  %909 = vmatpush.bf16.msra.mxu0 %v328
  %910 = vmatpush.bf16.msra.mxu0 %v326
  %911 = vmatpush.bf16.msra.mxu0 %v324
  %912 = vmatpush.bf16.msra.mxu0 %v322
  %913 = vmatmul.bf16.gmra.mxu0 %v891
  %v914 = vpop.f32.mrf.mxu0
  %v915 = vadd.f32 %v902, %v914
  %v916 = vpop.f32.mrf.mxu0
  %917 = vdwg.mxu0
  %918 = vmatpush.bf16.msra.mxu0 %v321
  %919 = vmatpush.bf16.msra.mxu0 %v319
  %920 = vmatpush.bf16.msra.mxu0 %v317
  %921 = vmatpush.bf16.msra.mxu0 %v315
  %922 = vmatpush.bf16.msra.mxu0 %v313
  %923 = vmatpush.bf16.msra.mxu0 %v311
  %924 = vmatpush.bf16.msra.mxu0 %v309
  %925 = vmatpush.bf16.msra.mxu0 %v307
  %926 = vmatmul.bf16.gmra.mxu0 %v890
  %v927 = vpop.f32.mrf.mxu0
  %v928 = vadd.f32 0.0, %v927
  %v929 = vpop.f32.mrf.mxu0
  %930 = vdwg.mxu0
  %931 = vmatpush.bf16.msra.mxu0 %v337
  %932 = vmatpush.bf16.msra.mxu0 %v335
  %933 = vmatpush.bf16.msra.mxu0 %v333
  %934 = vmatpush.bf16.msra.mxu0 %v331
  %935 = vmatpush.bf16.msra.mxu0 %v329
  %936 = vmatpush.bf16.msra.mxu0 %v327
  %937 = vmatpush.bf16.msra.mxu0 %v325
  %938 = vmatpush.bf16.msra.mxu0 %v323
  %939 = vmatmul.bf16.gmra.mxu0 %v891
  %v940 = vpop.f32.mrf.mxu0
  %v941 = vadd.f32 %v928, %v940
  %v942 = vpop.f32.mrf.mxu0
  %943 = vdwg.mxu0
  %v944 = vmul.f32 %v915, %v127
  %v945 = vmul.f32 %v941, %v140
  %v946 = vadd.f32 %v944, %v154
  %v947 = vadd.f32 %v945, %v167
  %v948 = vpack.c.bf16 %v947, %v946
  %949 = vst [vmem:[%s5] sm:$0xff] %v948
  // Predicated region
  $region22: #{neural_collage_forward.3} parent=0 // pred_check
    _
  $region23: #{neural_collage_forward.3} parent=0 // pred_check_branch
    %951 = sbr.rel (0) target = $region25
  $region24: #{neural_collage_forward.3} parent=0 // pred_region
    _
  $region25: #{neural_collage_forward.3} parent=0 // pred_fallthru
    _
  // Predicated region
  $region26: #{neural_collage_forward.3} parent=0 // pred_check
    _
  $region27: #{neural_collage_forward.3} parent=0 // pred_check_branch
    %953 = sbr.rel (0) target = $region29
  $region28: #{neural_collage_forward.3} parent=0 // pred_region
    _
  $region29: #{neural_collage_forward.3} parent=0 // pred_fallthru
    _

</llo_original>
